<compile_context>
chip_gen: v5e
topology: v5e:2x2
jax: 0.10.0
libtpu: 0.0.40
codegen_flags: <defaults>
</compile_context>

<pallas_src>
import functools

import jax
import jax.numpy as jnp
from jax.experimental import pallas as pl
from jax.experimental.pallas import tpu as pltpu


# ---------------------------------------------------------------------------
# helpers
# ---------------------------------------------------------------------------
def _round_up(x, m):
    return (x + m - 1) // m * m


def _pad_and_tile(n):
    """Pad node count to tile-friendly size, pick (row tile, contraction tile)."""
    n_pad = _round_up(n, 128)
    if n_pad <= 256:
        return n_pad, n_pad, n_pad
    if n_pad <= 1024:
        n_pad = _round_up(n_pad, 256)
        return n_pad, 256, n_pad
    # v7x-safe budget: bf16 A tiles, double-buffered -> 2*256*1024*2B = 1 MiB
    n_pad = _round_up(n_pad, 1024)
    return n_pad, 256, 1024


def _pad2(x, rows, cols):
    return jnp.pad(x, ((0, rows - x.shape[0]), (0, cols - x.shape[1])))


# ---------------------------------------------------------------------------
# Pallas kernel: fused SAGEConv (+ optional ReLU, + optional final Linear)
# ---------------------------------------------------------------------------
def _sage_kernel(a_ref, xn_ref, xr_ref, inv_ref, w_ref, b_ref, *rest,
                 c_pad, apply_relu, fuse_linear):
    if fuse_linear:
        wlin_ref, blin_ref, o_ref, acc_ref = rest
    else:
        o_ref, acc_ref = rest

    k = pl.program_id(1)

    @pl.when(k == 0)
    def _init():
        acc_ref[...] = jnp.zeros_like(acc_ref)

    # Neighbor-sum on the MXU: bf16 counts x bf16 features, f32 accumulation.
    acc_ref[:, :c_pad] = acc_ref[:, :c_pad] + jnp.dot(
        a_ref[...], xn_ref[...], preferred_element_type=jnp.float32)

    @pl.when(k == pl.num_programs(1) - 1)
    def _finalize():
        # sum -> mean via exact f32 per-row 1/deg scale (VPU).
        acc_ref[:, :c_pad] = acc_ref[:, :c_pad] * inv_ref[...]
        # Root features into the right half: [mean_agg | x_root] lets lin_l
        # and lin_r run as a single fused MXU matmul against [W_l; W_r].
        acc_ref[:, c_pad:] = xr_ref[...].astype(jnp.float32)
        cat = acc_ref[...].astype(jnp.bfloat16)
        h = jnp.dot(cat, w_ref[...], preferred_element_type=jnp.float32)
        h = h + b_ref[...]
        if apply_relu:
            h = jnp.maximum(h, 0.0)
        if fuse_linear:
            h = jnp.dot(h.astype(jnp.bfloat16), wlin_ref[...],
                        preferred_element_type=jnp.float32) + blin_ref[...]
        o_ref[...] = h.astype(o_ref.dtype)


def _sage_call(a, x_nb, x_root, inv_deg, w_cat, b, *, tm, tk, apply_relu,
               w_lin=None, b_lin=None, out_dtype=jnp.float32):
    """One fused SAGE layer.  a:[Np,Np] bf16 counts, x_*:[Np,Cp] bf16,
    inv_deg:[Np,1] f32, w_cat:[2*Cp,Hp] bf16, b:[1,Hp] f32."""
    n_pad = a.shape[0]
    c_pad = x_nb.shape[1]
    h_pad = w_cat.shape[1]
    fuse_linear = w_lin is not None
    out_dim = w_lin.shape[1] if fuse_linear else h_pad
    grid = (n_pad // tm, n_pad // tk)

    in_specs = [
        pl.BlockSpec((tm, tk), lambda i, k: (i, k)),             # A counts tile
        pl.BlockSpec((tk, c_pad), lambda i, k: (k, 0)),          # neighbor feats
        pl.BlockSpec((tm, c_pad), lambda i, k: (i, 0)),          # root feats
        pl.BlockSpec((tm, 1), lambda i, k: (i, 0)),              # 1/deg (f32)
        pl.BlockSpec((2 * c_pad, h_pad), lambda i, k: (0, 0)),   # [W_l; W_r]
        pl.BlockSpec((1, h_pad), lambda i, k: (0, 0)),           # bias
    ]
    args = [a, x_nb, x_root, inv_deg, w_cat, b]
    if fuse_linear:
        in_specs += [
            pl.BlockSpec((h_pad, out_dim), lambda i, k: (0, 0)), # W_lin
            pl.BlockSpec((1, out_dim), lambda i, k: (0, 0)),     # b_lin
        ]
        args += [w_lin, b_lin]

    kernel = functools.partial(_sage_kernel, c_pad=c_pad,
                               apply_relu=apply_relu, fuse_linear=fuse_linear)

    return pl.pallas_call(
        kernel,
        out_shape=jax.ShapeDtypeStruct((n_pad, out_dim), out_dtype),
        grid=grid,
        in_specs=in_specs,
        out_specs=pl.BlockSpec((tm, out_dim), lambda i, k: (i, 0)),
        scratch_shapes=[pltpu.VMEM((tm, 2 * c_pad), jnp.float32)],
        compiler_params=pltpu.CompilerParams(
            dimension_semantics=("parallel", "arbitrary"),
            vmem_limit_bytes=32 * 1024 * 1024),
    )(*args)


# ---------------------------------------------------------------------------
# Plain-JAX glue
# ---------------------------------------------------------------------------
def _build_adj(edge_index, n_pad):
    """Dense edge-count matrix (bf16, exact small ints) + f32 1/in_degree."""
    src = edge_index[0]
    dst = edge_index[1]
    counts = jnp.zeros((n_pad, n_pad), jnp.float32)
    counts = counts.at[dst, src].add(1.0)
    deg = jnp.sum(counts, axis=1, keepdims=True)
    inv = jnp.where(deg > 0.0, 1.0 / jnp.maximum(deg, 1.0), 0.0)
    return counts.astype(jnp.bfloat16), inv


def _cat_sage_weights(conv, c_pad, h_pad):
    w_l = _pad2(conv["w_l"], c_pad, h_pad)
    w_r = _pad2(conv["w_r"], c_pad, h_pad)
    return jnp.concatenate([w_l, w_r], axis=0).astype(jnp.bfloat16)


def init_params(key, in_channels, hidden_channels, out_channels):
    def uniform(k, shape, fan_in):
        bound = 1.0 / jnp.sqrt(jnp.float32(fan_in))
        return jax.random.uniform(k, shape, jnp.float32, -bound, bound)

    keys = jax.random.split(key, 8)
    return {
        "conv1": {
            "w_l": uniform(keys[0], (in_channels, hidden_channels), in_channels),
            "b_l": uniform(keys[1], (1, hidden_channels), in_channels),
            "w_r": uniform(keys[2], (in_channels, hidden_channels), in_channels),
        },
        "conv2": {
            "w_l": uniform(keys[3], (hidden_channels, hidden_channels), hidden_channels),
            "b_l": uniform(keys[4], (1, hidden_channels), hidden_channels),
            "w_r": uniform(keys[5], (hidden_channels, hidden_channels), hidden_channels),
        },
        "lin": {
            "w": uniform(keys[6], (hidden_channels, out_channels), hidden_channels),
            "b": uniform(keys[7], (1, out_channels), hidden_channels),
        },
    }


@jax.jit
def gnn_forward(params, x, edge_index):
    n, c_in = x.shape
    hidden = params["conv1"]["w_l"].shape[1]
    out_ch = params["lin"]["w"].shape[1]

    n_pad, tm, tk = _pad_and_tile(n)
    c_pad = _round_up(c_in, 128)
    h_pad = _round_up(hidden, 128)
    o_pad = _round_up(out_ch, 128)

    a, inv_deg = _build_adj(edge_index, n_pad)
    x_p = _pad2(x, n_pad, c_pad).astype(jnp.bfloat16)

    w1 = _cat_sage_weights(params["conv1"], c_pad, h_pad)
    b1 = _pad2(params["conv1"]["b_l"], 1, h_pad)
    w2 = _cat_sage_weights(params["conv2"], h_pad, h_pad)
    b2 = _pad2(params["conv2"]["b_l"], 1, h_pad)
    w_lin = _pad2(params["lin"]["w"], h_pad, o_pad).astype(jnp.bfloat16)
    b_lin = _pad2(params["lin"]["b"], 1, o_pad)

    # SAGEConv1 + ReLU (bf16 hidden feeds the next layer's MXU directly).
    h = _sage_call(a, x_p, x_p, inv_deg, w1, b1, tm=tm, tk=tk,
                   apply_relu=True, out_dtype=jnp.bfloat16)
    # SAGEConv2 + ReLU + Linear fused into one kernel.
    y = _sage_call(a, h, h, inv_deg, w2, b2, tm=tm, tk=tk,
                   apply_relu=True, w_lin=w_lin, b_lin=b_lin,
                   out_dtype=jnp.float32)
    return y[:n, :out_ch]


def _reference_forward(params, x, edge_index):
    """Pure-JAX f32 reference of the PyTorch module (PyG SAGEConv mean aggr)."""
    n = x.shape[0]
    src, dst = edge_index[0], edge_index[1]
    a = jnp.zeros((n, n), jnp.float32).at[dst, src].add(1.0)
    deg = a.sum(axis=1, keepdims=True)
    a = jnp.where(deg > 0, a / jnp.maximum(deg, 1.0), 0.0)

    def sage(p, h):
        return (a @ h) @ p["w_l"] + p["b_l"] + h @ p["w_r"]

    h = jax.nn.relu(sage(params["conv1"], x))
    h = jax.nn.relu(sage(params["conv2"], h))
    return h @ params["lin"]["w"] + params["lin"]["b"]


# ---------------------------------------------------------------------------
if __name__ == "__main__":
    N = 16            # nodes
    IN_CH = 8         # input feature dim (SAGEConv((-1,-1), ...) is lazy)
    HIDDEN = 32       # hidden_channels
    OUT_CH = 4        # out_channels
    E = 40            # edges

    key = jax.random.PRNGKey(0)
    k_x, k_e, k_p = jax.random.split(key, 3)

    x = jax.random.normal(k_x, (N, IN_CH), jnp.float32)
    edge_index = jax.random.randint(k_e, (2, E), 0, N, jnp.int32)
    params = init_params(k_p, IN_CH, HIDDEN, OUT_CH)

    out = gnn_forward(params, x, edge_index)
    jax.block_until_ready(out)

    assert out.shape == (N, OUT_CH), out.shape
    assert out.dtype == jnp.float32
    assert bool(jnp.all(jnp.isfinite(out)))

    # Loose tolerance: kernel runs MXU matmuls in bf16 (f32 accumulation).
    ref = _reference_forward(params, x, edge_index)
    assert bool(jnp.allclose(out, ref, rtol=5e-2, atol=5e-2))

    print("KERNEL_OK")
</pallas_src>

<mosaic_0001>
module attributes {stable_mosaic.version = 11 : i64} {
  func.func @_sage_kernel(%arg0: i32, %arg1: i32, %arg2: memref<128x128xbf16, #tpu.memory_space<vmem>>, %arg3: memref<128x128xbf16, #tpu.memory_space<vmem>>, %arg4: memref<128x128xbf16, #tpu.memory_space<vmem>>, %arg5: memref<128x1xf32, #tpu.memory_space<vmem>>, %arg6: memref<256x128xbf16, #tpu.memory_space<vmem>>, %arg7: memref<1x128xf32, #tpu.memory_space<vmem>>, %arg8: memref<128x128xbf16, #tpu.memory_space<vmem>>, %arg9: memref<128x256xf32, #tpu.memory_space<vmem>>) attributes {dimension_semantics = [#tpu.dimension_semantics<parallel>, #tpu.dimension_semantics<arbitrary>], iteration_bounds = array<i64: 1, 1>, scalar_prefetch = 0 : i64, scratch_operands = 1 : i64, tpu.core_type = #tpu.core_type<tc>, window_params = [{transform_indices = @transform_0, window_bounds = array<i64: 128, 128>}, {transform_indices = @transform_1, window_bounds = array<i64: 128, 128>}, {transform_indices = @transform_2, window_bounds = array<i64: 128, 128>}, {transform_indices = @transform_3, window_bounds = array<i64: 128, 1>}, {pipeline_mode = #tpu.pipeline_mode<synchronous>, transform_indices = @transform_4, window_bounds = array<i64: 256, 128>}, {pipeline_mode = #tpu.pipeline_mode<synchronous>, transform_indices = @transform_5, window_bounds = array<i64: 1, 128>}, {transform_indices = @transform_6, window_bounds = array<i64: 128, 128>}]} {
    %c0_i32 = arith.constant 0 : i32
    %0 = arith.cmpi eq, %arg1, %c0_i32 : i32
    %1 = arith.extui %0 : i1 to i32
    %c0_i32_0 = arith.constant 0 : i32
    %2 = arith.cmpi ne, %1, %c0_i32_0 : i32
    scf.if %2 {
      %cst_10 = arith.constant 0.000000e+00 : f32
      %12 = vector.broadcast %cst_10 : f32 to vector<128x256xf32>
      %c0_11 = arith.constant 0 : index
      %c0_12 = arith.constant 0 : index
      %13 = vector.load %arg9[%c0_11, %c0_12] : memref<128x256xf32, #tpu.memory_space<vmem>>, vector<128x256xf32>
      tpu.vector_store %arg9[%c0_11, %c0_12], %12 {strides = array<i32>} : memref<128x256xf32, #tpu.memory_space<vmem>>, vector<128x256xf32>,
    } else {
    }
    %c0 = arith.constant 0 : index
    %c0_1 = arith.constant 0 : index
    %3 = vector.load %arg9[%c0, %c0_1] : memref<128x256xf32, #tpu.memory_space<vmem>>, vector<128x128xf32>
    %c0_2 = arith.constant 0 : index
    %c0_3 = arith.constant 0 : index
    %4 = vector.load %arg2[%c0_2, %c0_3] : memref<128x128xbf16, #tpu.memory_space<vmem>>, vector<128x128xbf16>
    %c0_4 = arith.constant 0 : index
    %c0_5 = arith.constant 0 : index
    %5 = vector.load %arg3[%c0_4, %c0_5] : memref<128x128xbf16, #tpu.memory_space<vmem>>, vector<128x128xbf16>
    %cst = arith.constant dense<0.000000e+00> : vector<128x128xf32>
    %6 = tpu.matmul %4, %5, %cst {dimension_numbers = #tpu.dot_dimension_numbers<[1], [0], [0], [1], [0, 0, 1, 1], [], []>} : vector<128x128xbf16>, vector<128x128xbf16>, vector<128x128xf32> -> vector<128x128xf32>
    %7 = arith.addf %3, %6 : vector<128x128xf32>
    %c0_6 = arith.constant 0 : index
    %c0_7 = arith.constant 0 : index
    %8 = vector.load %arg9[%c0_6, %c0_7] : memref<128x256xf32, #tpu.memory_space<vmem>>, vector<128x128xf32>
    tpu.vector_store %arg9[%c0_6, %c0_7], %7 {strides = array<i32>} : memref<128x256xf32, #tpu.memory_space<vmem>>, vector<128x128xf32>,
    %c0_i32_8 = arith.constant 0 : i32
    %9 = arith.cmpi eq, %arg1, %c0_i32_8 : i32
    %10 = arith.extui %9 : i1 to i32
    %c0_i32_9 = arith.constant 0 : i32
    %11 = arith.cmpi ne, %10, %c0_i32_9 : i32
    scf.if %11 {
      %c0_10 = arith.constant 0 : index
      %c0_11 = arith.constant 0 : index
      %12 = vector.load %arg9[%c0_10, %c0_11] : memref<128x256xf32, #tpu.memory_space<vmem>>, vector<128x128xf32>
      %c0_12 = arith.constant 0 : index
      %c0_13 = arith.constant 0 : index
      %13 = vector.load %arg5[%c0_12, %c0_13] : memref<128x1xf32, #tpu.memory_space<vmem>>, vector<128x1xf32>
      %14 = vector.broadcast %13 : vector<128x1xf32> to vector<128x128xf32>
      %15 = arith.mulf %12, %14 : vector<128x128xf32>
      %c0_14 = arith.constant 0 : index
      %c0_15 = arith.constant 0 : index
      %16 = vector.load %arg9[%c0_14, %c0_15] : memref<128x256xf32, #tpu.memory_space<vmem>>, vector<128x128xf32>
      tpu.vector_store %arg9[%c0_14, %c0_15], %15 {strides = array<i32>} : memref<128x256xf32, #tpu.memory_space<vmem>>, vector<128x128xf32>,
      %c0_16 = arith.constant 0 : index
      %c0_17 = arith.constant 0 : index
      %17 = vector.load %arg4[%c0_16, %c0_17] : memref<128x128xbf16, #tpu.memory_space<vmem>>, vector<128x128xbf16>
      %18 = arith.extf %17 : vector<128x128xbf16> to vector<128x128xf32>
      %c0_18 = arith.constant 0 : index
      %c128 = arith.constant 128 : index
      %19 = vector.load %arg9[%c0_18, %c128] : memref<128x256xf32, #tpu.memory_space<vmem>>, vector<128x128xf32>
      tpu.vector_store %arg9[%c0_18, %c128], %18 {strides = array<i32>} : memref<128x256xf32, #tpu.memory_space<vmem>>, vector<128x128xf32>,
      %c0_19 = arith.constant 0 : index
      %c0_20 = arith.constant 0 : index
      %20 = vector.load %arg9[%c0_19, %c0_20] : memref<128x256xf32, #tpu.memory_space<vmem>>, vector<128x256xf32>
      %21 = arith.truncf %20 : vector<128x256xf32> to vector<128x256xbf16>
      %c0_21 = arith.constant 0 : index
      %c0_22 = arith.constant 0 : index
      %22 = vector.load %arg6[%c0_21, %c0_22] : memref<256x128xbf16, #tpu.memory_space<vmem>>, vector<256x128xbf16>
      %cst_23 = arith.constant dense<0.000000e+00> : vector<128x128xf32>
      %23 = tpu.matmul %21, %22, %cst_23 {dimension_numbers = #tpu.dot_dimension_numbers<[1], [0], [0], [1], [0, 0, 1, 1], [], []>} : vector<128x256xbf16>, vector<256x128xbf16>, vector<128x128xf32> -> vector<128x128xf32>
      %c0_24 = arith.constant 0 : index
      %c0_25 = arith.constant 0 : index
      %24 = vector.load %arg7[%c0_24, %c0_25] : memref<1x128xf32, #tpu.memory_space<vmem>>, vector<1x128xf32>
      %25 = vector.broadcast %24 : vector<1x128xf32> to vector<128x128xf32>
      %26 = arith.addf %23, %25 : vector<128x128xf32>
      %cst_26 = arith.constant 0.000000e+00 : f32
      %27 = vector.broadcast %cst_26 : f32 to vector<128x128xf32>
      %28 = arith.maximumf %26, %27 : vector<128x128xf32>
      %29 = arith.truncf %28 : vector<128x128xf32> to vector<128x128xbf16>
      %c0_27 = arith.constant 0 : index
      %c0_28 = arith.constant 0 : index
      %30 = vector.load %arg8[%c0_27, %c0_28] : memref<128x128xbf16, #tpu.memory_space<vmem>>, vector<128x128xbf16>
      tpu.vector_store %arg8[%c0_27, %c0_28], %29 {strides = array<i32>} : memref<128x128xbf16, #tpu.memory_space<vmem>>, vector<128x128xbf16>,
    } else {
    }
    return
  }
  func.func @transform_0(%arg0: i32, %arg1: i32) -> (i32, i32) {
    %c0_i32 = arith.constant 0 : i32
    return %arg0, %arg1 : i32, i32
  }
  func.func @transform_1(%arg0: i32, %arg1: i32) -> (i32, i32) {
    %c0_i32 = arith.constant 0 : i32
    %c0_i32_0 = arith.constant 0 : i32
    return %arg1, %c0_i32 : i32, i32
  }
  func.func @transform_2(%arg0: i32, %arg1: i32) -> (i32, i32) {
    %c0_i32 = arith.constant 0 : i32
    %c0_i32_0 = arith.constant 0 : i32
    return %arg0, %c0_i32 : i32, i32
  }
  func.func @transform_3(%arg0: i32, %arg1: i32) -> (i32, i32) {
    %c0_i32 = arith.constant 0 : i32
    %c0_i32_0 = arith.constant 0 : i32
    return %arg0, %c0_i32 : i32, i32
  }
  func.func @transform_4(%arg0: i32, %arg1: i32) -> (i32, i32) {
    %c0_i32 = arith.constant 0 : i32
    %c0_i32_0 = arith.constant 0 : i32
    %c0_i32_1 = arith.constant 0 : i32
    return %c0_i32, %c0_i32_0 : i32, i32
  }
  func.func @transform_5(%arg0: i32, %arg1: i32) -> (i32, i32) {
    %c0_i32 = arith.constant 0 : i32
    %c0_i32_0 = arith.constant 0 : i32
    %c0_i32_1 = arith.constant 0 : i32
    return %c0_i32, %c0_i32_0 : i32, i32
  }
  func.func @transform_6(%arg0: i32, %arg1: i32) -> (i32, i32) {
    %c0_i32 = arith.constant 0 : i32
    %c0_i32_0 = arith.constant 0 : i32
    return %arg0, %c0_i32 : i32, i32
  }
}

module attributes {stable_mosaic.version = 11 : i64} {
  func.func @_sage_kernel(%arg0: i32, %arg1: i32, %arg2: memref<128x128xbf16, #tpu.memory_space<vmem>>, %arg3: memref<128x128xbf16, #tpu.memory_space<vmem>>, %arg4: memref<128x128xbf16, #tpu.memory_space<vmem>>, %arg5: memref<128x1xf32, #tpu.memory_space<vmem>>, %arg6: memref<256x128xbf16, #tpu.memory_space<vmem>>, %arg7: memref<1x128xf32, #tpu.memory_space<vmem>>, %arg8: memref<128x128xbf16, #tpu.memory_space<vmem>>, %arg9: memref<1x128xf32, #tpu.memory_space<vmem>>, %arg10: memref<128x128xf32, #tpu.memory_space<vmem>>, %arg11: memref<128x256xf32, #tpu.memory_space<vmem>>) attributes {dimension_semantics = [#tpu.dimension_semantics<parallel>, #tpu.dimension_semantics<arbitrary>], iteration_bounds = array<i64: 1, 1>, scalar_prefetch = 0 : i64, scratch_operands = 1 : i64, tpu.core_type = #tpu.core_type<tc>, window_params = [{transform_indices = @transform_0, window_bounds = array<i64: 128, 128>}, {transform_indices = @transform_1, window_bounds = array<i64: 128, 128>}, {transform_indices = @transform_2, window_bounds = array<i64: 128, 128>}, {transform_indices = @transform_3, window_bounds = array<i64: 128, 1>}, {pipeline_mode = #tpu.pipeline_mode<synchronous>, transform_indices = @transform_4, window_bounds = array<i64: 256, 128>}, {pipeline_mode = #tpu.pipeline_mode<synchronous>, transform_indices = @transform_5, window_bounds = array<i64: 1, 128>}, {pipeline_mode = #tpu.pipeline_mode<synchronous>, transform_indices = @transform_6, window_bounds = array<i64: 128, 128>}, {pipeline_mode = #tpu.pipeline_mode<synchronous>, transform_indices = @transform_7, window_bounds = array<i64: 1, 128>}, {transform_indices = @transform_8, window_bounds = array<i64: 128, 128>}]} {
    %c0_i32 = arith.constant 0 : i32
    %0 = arith.cmpi eq, %arg1, %c0_i32 : i32
    %1 = arith.extui %0 : i1 to i32
    %c0_i32_0 = arith.constant 0 : i32
    %2 = arith.cmpi ne, %1, %c0_i32_0 : i32
    scf.if %2 {
      %cst_10 = arith.constant 0.000000e+00 : f32
      %12 = vector.broadcast %cst_10 : f32 to vector<128x256xf32>
      %c0_11 = arith.constant 0 : index
      %c0_12 = arith.constant 0 : index
      %13 = vector.load %arg11[%c0_11, %c0_12] : memref<128x256xf32, #tpu.memory_space<vmem>>, vector<128x256xf32>
      tpu.vector_store %arg11[%c0_11, %c0_12], %12 {strides = array<i32>} : memref<128x256xf32, #tpu.memory_space<vmem>>, vector<128x256xf32>,
    } else {
    }
    %c0 = arith.constant 0 : index
    %c0_1 = arith.constant 0 : index
    %3 = vector.load %arg11[%c0, %c0_1] : memref<128x256xf32, #tpu.memory_space<vmem>>, vector<128x128xf32>
    %c0_2 = arith.constant 0 : index
    %c0_3 = arith.constant 0 : index
    %4 = vector.load %arg2[%c0_2, %c0_3] : memref<128x128xbf16, #tpu.memory_space<vmem>>, vector<128x128xbf16>
    %c0_4 = arith.constant 0 : index
    %c0_5 = arith.constant 0 : index
    %5 = vector.load %arg3[%c0_4, %c0_5] : memref<128x128xbf16, #tpu.memory_space<vmem>>, vector<128x128xbf16>
    %cst = arith.constant dense<0.000000e+00> : vector<128x128xf32>
    %6 = tpu.matmul %4, %5, %cst {dimension_numbers = #tpu.dot_dimension_numbers<[1], [0], [0], [1], [0, 0, 1, 1], [], []>} : vector<128x128xbf16>, vector<128x128xbf16>, vector<128x128xf32> -> vector<128x128xf32>
    %7 = arith.addf %3, %6 : vector<128x128xf32>
    %c0_6 = arith.constant 0 : index
    %c0_7 = arith.constant 0 : index
    %8 = vector.load %arg11[%c0_6, %c0_7] : memref<128x256xf32, #tpu.memory_space<vmem>>, vector<128x128xf32>
    tpu.vector_store %arg11[%c0_6, %c0_7], %7 {strides = array<i32>} : memref<128x256xf32, #tpu.memory_space<vmem>>, vector<128x128xf32>,
    %c0_i32_8 = arith.constant 0 : i32
    %9 = arith.cmpi eq, %arg1, %c0_i32_8 : i32
    %10 = arith.extui %9 : i1 to i32
    %c0_i32_9 = arith.constant 0 : i32
    %11 = arith.cmpi ne, %10, %c0_i32_9 : i32
    scf.if %11 {
      %c0_10 = arith.constant 0 : index
      %c0_11 = arith.constant 0 : index
      %12 = vector.load %arg11[%c0_10, %c0_11] : memref<128x256xf32, #tpu.memory_space<vmem>>, vector<128x128xf32>
      %c0_12 = arith.constant 0 : index
      %c0_13 = arith.constant 0 : index
      %13 = vector.load %arg5[%c0_12, %c0_13] : memref<128x1xf32, #tpu.memory_space<vmem>>, vector<128x1xf32>
      %14 = vector.broadcast %13 : vector<128x1xf32> to vector<128x128xf32>
      %15 = arith.mulf %12, %14 : vector<128x128xf32>
      %c0_14 = arith.constant 0 : index
      %c0_15 = arith.constant 0 : index
      %16 = vector.load %arg11[%c0_14, %c0_15] : memref<128x256xf32, #tpu.memory_space<vmem>>, vector<128x128xf32>
      tpu.vector_store %arg11[%c0_14, %c0_15], %15 {strides = array<i32>} : memref<128x256xf32, #tpu.memory_space<vmem>>, vector<128x128xf32>,
      %c0_16 = arith.constant 0 : index
      %c0_17 = arith.constant 0 : index
      %17 = vector.load %arg4[%c0_16, %c0_17] : memref<128x128xbf16, #tpu.memory_space<vmem>>, vector<128x128xbf16>
      %18 = arith.extf %17 : vector<128x128xbf16> to vector<128x128xf32>
      %c0_18 = arith.constant 0 : index
      %c128 = arith.constant 128 : index
      %19 = vector.load %arg11[%c0_18, %c128] : memref<128x256xf32, #tpu.memory_space<vmem>>, vector<128x128xf32>
      tpu.vector_store %arg11[%c0_18, %c128], %18 {strides = array<i32>} : memref<128x256xf32, #tpu.memory_space<vmem>>, vector<128x128xf32>,
      %c0_19 = arith.constant 0 : index
      %c0_20 = arith.constant 0 : index
      %20 = vector.load %arg11[%c0_19, %c0_20] : memref<128x256xf32, #tpu.memory_space<vmem>>, vector<128x256xf32>
      %21 = arith.truncf %20 : vector<128x256xf32> to vector<128x256xbf16>
      %c0_21 = arith.constant 0 : index
      %c0_22 = arith.constant 0 : index
      %22 = vector.load %arg6[%c0_21, %c0_22] : memref<256x128xbf16, #tpu.memory_space<vmem>>, vector<256x128xbf16>
      %cst_23 = arith.constant dense<0.000000e+00> : vector<128x128xf32>
      %23 = tpu.matmul %21, %22, %cst_23 {dimension_numbers = #tpu.dot_dimension_numbers<[1], [0], [0], [1], [0, 0, 1, 1], [], []>} : vector<128x256xbf16>, vector<256x128xbf16>, vector<128x128xf32> -> vector<128x128xf32>
      %c0_24 = arith.constant 0 : index
      %c0_25 = arith.constant 0 : index
      %24 = vector.load %arg7[%c0_24, %c0_25] : memref<1x128xf32, #tpu.memory_space<vmem>>, vector<1x128xf32>
      %25 = vector.broadcast %24 : vector<1x128xf32> to vector<128x128xf32>
      %26 = arith.addf %23, %25 : vector<128x128xf32>
      %cst_26 = arith.constant 0.000000e+00 : f32
      %27 = vector.broadcast %cst_26 : f32 to vector<128x128xf32>
      %28 = arith.maximumf %26, %27 : vector<128x128xf32>
      %29 = arith.truncf %28 : vector<128x128xf32> to vector<128x128xbf16>
      %c0_27 = arith.constant 0 : index
      %c0_28 = arith.constant 0 : index
      %30 = vector.load %arg8[%c0_27, %c0_28] : memref<128x128xbf16, #tpu.memory_space<vmem>>, vector<128x128xbf16>
      %cst_29 = arith.constant dense<0.000000e+00> : vector<128x128xf32>
      %31 = tpu.matmul %29, %30, %cst_29 {dimension_numbers = #tpu.dot_dimension_numbers<[1], [0], [0], [1], [0, 0, 1, 1], [], []>} : vector<128x128xbf16>, vector<128x128xbf16>, vector<128x128xf32> -> vector<128x128xf32>
      %c0_30 = arith.constant 0 : index
      %c0_31 = arith.constant 0 : index
      %32 = vector.load %arg9[%c0_30, %c0_31] : memref<1x128xf32, #tpu.memory_space<vmem>>, vector<1x128xf32>
      %33 = vector.broadcast %32 : vector<1x128xf32> to vector<128x128xf32>
      %34 = arith.addf %31, %33 : vector<128x128xf32>
      %c0_32 = arith.constant 0 : index
      %c0_33 = arith.constant 0 : index
      %35 = vector.load %arg10[%c0_32, %c0_33] : memref<128x128xf32, #tpu.memory_space<vmem>>, vector<128x128xf32>
      tpu.vector_store %arg10[%c0_32, %c0_33], %34 {strides = array<i32>} : memref<128x128xf32, #tpu.memory_space<vmem>>, vector<128x128xf32>,
    } else {
    }
    return
  }
  func.func @transform_0(%arg0: i32, %arg1: i32) -> (i32, i32) {
    %c0_i32 = arith.constant 0 : i32
    return %arg0, %arg1 : i32, i32
  }
  func.func @transform_1(%arg0: i32, %arg1: i32) -> (i32, i32) {
    %c0_i32 = arith.constant 0 : i32
    %c0_i32_0 = arith.constant 0 : i32
    return %arg1, %c0_i32 : i32, i32
  }
  func.func @transform_2(%arg0: i32, %arg1: i32) -> (i32, i32) {
    %c0_i32 = arith.constant 0 : i32
    %c0_i32_0 = arith.constant 0 : i32
    return %arg0, %c0_i32 : i32, i32
  }
  func.func @transform_3(%arg0: i32, %arg1: i32) -> (i32, i32) {
    %c0_i32 = arith.constant 0 : i32
    %c0_i32_0 = arith.constant 0 : i32
    return %arg0, %c0_i32 : i32, i32
  }
  func.func @transform_4(%arg0: i32, %arg1: i32) -> (i32, i32) {
    %c0_i32 = arith.constant 0 : i32
    %c0_i32_0 = arith.constant 0 : i32
    %c0_i32_1 = arith.constant 0 : i32
    return %c0_i32, %c0_i32_0 : i32, i32
  }
  func.func @transform_5(%arg0: i32, %arg1: i32) -> (i32, i32) {
    %c0_i32 = arith.constant 0 : i32
    %c0_i32_0 = arith.constant 0 : i32
    %c0_i32_1 = arith.constant 0 : i32
    return %c0_i32, %c0_i32_0 : i32, i32
  }
  func.func @transform_6(%arg0: i32, %arg1: i32) -> (i32, i32) {
    %c0_i32 = arith.constant 0 : i32
    %c0_i32_0 = arith.constant 0 : i32
    %c0_i32_1 = arith.constant 0 : i32
    return %c0_i32, %c0_i32_0 : i32, i32
  }
  func.func @transform_7(%arg0: i32, %arg1: i32) -> (i32, i32) {
    %c0_i32 = arith.constant 0 : i32
    %c0_i32_0 = arith.constant 0 : i32
    %c0_i32_1 = arith.constant 0 : i32
    return %c0_i32, %c0_i32_0 : i32, i32
  }
  func.func @transform_8(%arg0: i32, %arg1: i32) -> (i32, i32) {
    %c0_i32 = arith.constant 0 : i32
    %c0_i32_0 = arith.constant 0 : i32
    return %arg0, %c0_i32 : i32, i32
  }
}

</mosaic_0001>

<llo_original>
// kernel: gnn_forward.2
$region0: #{gnn_forward.2}
  #allocation0 [shape = 'u32[]', space=smem, size = 0x4, offset = 0x4, fixed_abs, tag = 'smem constant byte address 0x4 - core index']
  #allocation1 [shape = 'u32[72,128]{1,0:T(1,128)}', space=vmem, size = 0x9000, scoped, tag = 'internal scratch']
  #allocation2 [shape = 'f32[128,256]{1,0:T(8,128)}', space=vmem, size = 0x20000, scoped, tag = 'scratch operand']
  %s0 = inlined_call_operand.vmem [shape: bf16[128,128], index: 0, kind: input, shape index: {}]
  %s1 = inlined_call_operand.vmem [shape: bf16[128,128], index: 1, kind: input, shape index: {}, may-alias: {1,2}]
  %s2 = inlined_call_operand.vmem [shape: bf16[128,128], index: 2, kind: input, shape index: {}, may-alias: {1,2}]
  %s3 = inlined_call_operand.vmem [shape: f32[128,1], index: 3, kind: input, shape index: {}]
  %s4 = inlined_call_operand.vmem [shape: bf16[256,128], index: 4, kind: input, shape index: {}]
  %s5 = inlined_call_operand.vmem [shape: f32[1,128], index: 5, kind: input, shape index: {}]
  %s6 = inlined_call_operand.vmem [shape: bf16[128,128], index: 6, kind: output, shape index: {}]
  %s7 = sld [smem:[#allocation0]]
  $region42: #{gnn_forward.2} parent=0
    _
  %s9 = ssub.s32 1, %s7
  %s10 = scalar_select 0, %s9, %s7
  // Predicated region
  $region2: #{gnn_forward.2} parent=0 // pred_check
    _
  $region3: #{gnn_forward.2} parent=0 // pred_check_branch
    %12 = sbr.rel (0) target = $region5
  $region4: #{gnn_forward.2} parent=0 // pred_region
    _
  $region5: #{gnn_forward.2} parent=0 // pred_fallthru
    _
  // Predicated region
  $region6: #{gnn_forward.2} parent=0 // pred_check
    _
  $region7: #{gnn_forward.2} parent=0 // pred_check_branch
    %14 = sbr.rel (0) target = $region9
  $region8: #{gnn_forward.2} parent=0 // pred_region
    _
  $region9: #{gnn_forward.2} parent=0 // pred_fallthru
    _
  // Predicated region
  $region10: #{gnn_forward.2} parent=0 // pred_check
    _
  $region11: #{gnn_forward.2} parent=0 // pred_check_branch
    %16 = sbr.rel (0) target = $region13
  $region12: #{gnn_forward.2} parent=0 // pred_region
    _
  $region13: #{gnn_forward.2} parent=0 // pred_fallthru
    _
  // Predicated region
  $region14: #{gnn_forward.2} parent=0 // pred_check
    _
  $region15: #{gnn_forward.2} parent=0 // pred_check_branch
    %18 = sbr.rel (0) target = $region17
  $region16: #{gnn_forward.2} parent=0 // pred_region
    _
  $region17: #{gnn_forward.2} parent=0 // pred_fallthru
    _
  // Predicated region
  $region18: #{gnn_forward.2} parent=0 // pred_check
    _
  $region19: #{gnn_forward.2} parent=0 // pred_check_branch
    %20 = sbr.rel (0) target = $region21
  $region20: #{gnn_forward.2} parent=0 // pred_region
    _
  $region21: #{gnn_forward.2} parent=0 // pred_fallthru
    _
  // Predicated region
  $region22: #{gnn_forward.2} parent=0 // pred_check
    _
  $region23: #{gnn_forward.2} parent=0 // pred_check_branch
    %22 = sbr.rel (0) target = $region25
  $region24: #{gnn_forward.2} parent=0 // pred_region
    _
  $region25: #{gnn_forward.2} parent=0 // pred_fallthru
    _
  %p23 = scmp.eq.s32.totalorder 0, 0
  // Predicated region
  $region26: #{gnn_forward.2} parent=0 // pred_check
    %p24 = pneg %p23
  $region27: #{gnn_forward.2} parent=0 // pred_check_branch
    %26 = sbr.rel (%p24) target = $region29
  $region28: #{gnn_forward.2} parent=0 // pred_region
    %27 = vst [vmem:[#allocation2] sm:$0xff] 0.0
    %28 = vst [vmem:[#allocation2 + $0x8] sm:$0xff] 0.0
    %29 = vst [vmem:[#allocation2 + $0x10] sm:$0xff] 0.0
    %30 = vst [vmem:[#allocation2 + $0x18] sm:$0xff] 0.0
    %31 = vst [vmem:[#allocation2 + $0x20] sm:$0xff] 0.0
    %32 = vst [vmem:[#allocation2 + $0x28] sm:$0xff] 0.0
    %33 = vst [vmem:[#allocation2 + $0x30] sm:$0xff] 0.0
    %34 = vst [vmem:[#allocation2 + $0x38] sm:$0xff] 0.0
    %35 = vst [vmem:[#allocation2 + $0x40] sm:$0xff] 0.0
    %36 = vst [vmem:[#allocation2 + $0x48] sm:$0xff] 0.0
    %37 = vst [vmem:[#allocation2 + $0x50] sm:$0xff] 0.0
    %38 = vst [vmem:[#allocation2 + $0x58] sm:$0xff] 0.0
    %39 = vst [vmem:[#allocation2 + $0x60] sm:$0xff] 0.0
    %40 = vst [vmem:[#allocation2 + $0x68] sm:$0xff] 0.0
    %41 = vst [vmem:[#allocation2 + $0x70] sm:$0xff] 0.0
    %42 = vst [vmem:[#allocation2 + $0x78] sm:$0xff] 0.0
    %43 = vst [vmem:[#allocation2 + $0x80] sm:$0xff] 0.0
    %44 = vst [vmem:[#allocation2 + $0x88] sm:$0xff] 0.0
    %45 = vst [vmem:[#allocation2 + $0x90] sm:$0xff] 0.0
    %46 = vst [vmem:[#allocation2 + $0x98] sm:$0xff] 0.0
    %47 = vst [vmem:[#allocation2 + $0xa0] sm:$0xff] 0.0
    %48 = vst [vmem:[#allocation2 + $0xa8] sm:$0xff] 0.0
    %49 = vst [vmem:[#allocation2 + $0xb0] sm:$0xff] 0.0
    %50 = vst [vmem:[#allocation2 + $0xb8] sm:$0xff] 0.0
    %51 = vst [vmem:[#allocation2 + $0xc0] sm:$0xff] 0.0
    %52 = vst [vmem:[#allocation2 + $0xc8] sm:$0xff] 0.0
    %53 = vst [vmem:[#allocation2 + $0xd0] sm:$0xff] 0.0
    %54 = vst [vmem:[#allocation2 + $0xd8] sm:$0xff] 0.0
    %55 = vst [vmem:[#allocation2 + $0xe0] sm:$0xff] 0.0
    %56 = vst [vmem:[#allocation2 + $0xe8] sm:$0xff] 0.0
    %57 = vst [vmem:[#allocation2 + $0xf0] sm:$0xff] 0.0
    %58 = vst [vmem:[#allocation2 + $0xf8] sm:$0xff] 0.0
  $region29: #{gnn_forward.2} parent=0 // pred_fallthru
    _
  %v59 = vld [vmem:[#allocation2] sm:$0xff]
  %v60 = vld [vmem:[#allocation2 + $0x10] sm:$0xff]
  %v61 = vld [vmem:[#allocation2 + $0x20] sm:$0xff]
  %v62 = vld [vmem:[#allocation2 + $0x30] sm:$0xff]
  %v63 = vld [vmem:[#allocation2 + $0x40] sm:$0xff]
  %v64 = vld [vmem:[#allocation2 + $0x50] sm:$0xff]
  %v65 = vld [vmem:[#allocation2 + $0x60] sm:$0xff]
  %v66 = vld [vmem:[#allocation2 + $0x70] sm:$0xff]
  %v67 = vld [vmem:[#allocation2 + $0x80] sm:$0xff]
  %v68 = vld [vmem:[#allocation2 + $0x90] sm:$0xff]
  %v69 = vld [vmem:[#allocation2 + $0xa0] sm:$0xff]
  %v70 = vld [vmem:[#allocation2 + $0xb0] sm:$0xff]
  %v71 = vld [vmem:[#allocation2 + $0xc0] sm:$0xff]
  %v72 = vld [vmem:[#allocation2 + $0xd0] sm:$0xff]
  %v73 = vld [vmem:[#allocation2 + $0xe0] sm:$0xff]
  %v74 = vld [vmem:[#allocation2 + $0xf0] sm:$0xff]
  %v75 = vld [vmem:[%s0] sm:$0xf]
  %v76 = vld [vmem:[%s0 + $0x4] sm:$0xf]
  %v77 = vld [vmem:[%s0 + $0x8] sm:$0xf]
  %v78 = vld [vmem:[%s0 + $0xc] sm:$0xf]
  %v79 = vld [vmem:[%s0 + $0x10] sm:$0xf]
  %v80 = vld [vmem:[%s0 + $0x14] sm:$0xf]
  %v81 = vld [vmem:[%s0 + $0x18] sm:$0xf]
  %v82 = vld [vmem:[%s0 + $0x1c] sm:$0xf]
  %v83 = vld [vmem:[%s0 + $0x20] sm:$0xf]
  %v84 = vld [vmem:[%s0 + $0x24] sm:$0xf]
  %v85 = vld [vmem:[%s0 + $0x28] sm:$0xf]
  %v86 = vld [vmem:[%s0 + $0x2c] sm:$0xf]
  %v87 = vld [vmem:[%s0 + $0x30] sm:$0xf]
  %v88 = vld [vmem:[%s0 + $0x34] sm:$0xf]
  %v89 = vld [vmem:[%s0 + $0x38] sm:$0xf]
  %v90 = vld [vmem:[%s0 + $0x3c] sm:$0xf]
  %v91 = vld [vmem:[%s1] sm:$0xf]
  %v92 = vld [vmem:[%s1 + $0x4] sm:$0xf]
  %v93 = vld [vmem:[%s1 + $0x8] sm:$0xf]
  %v94 = vld [vmem:[%s1 + $0xc] sm:$0xf]
  %v95 = vld [vmem:[%s1 + $0x10] sm:$0xf]
  %v96 = vld [vmem:[%s1 + $0x14] sm:$0xf]
  %v97 = vld [vmem:[%s1 + $0x18] sm:$0xf]
  %v98 = vld [vmem:[%s1 + $0x1c] sm:$0xf]
  %v99 = vld [vmem:[%s1 + $0x20] sm:$0xf]
  %v100 = vld [vmem:[%s1 + $0x24] sm:$0xf]
  %v101 = vld [vmem:[%s1 + $0x28] sm:$0xf]
  %v102 = vld [vmem:[%s1 + $0x2c] sm:$0xf]
  %v103 = vld [vmem:[%s1 + $0x30] sm:$0xf]
  %v104 = vld [vmem:[%s1 + $0x34] sm:$0xf]
  %v105 = vld [vmem:[%s1 + $0x38] sm:$0xf]
  %v106 = vld [vmem:[%s1 + $0x3c] sm:$0xf]
  %v123 = vunpack.c.l.b16 %v75
  %v124 = vunpack.c.l.b16 %v76
  %v125 = vunpack.c.l.b16 %v77
  %v126 = vunpack.c.l.b16 %v78
  %v127 = vunpack.c.l.b16 %v79
  %v128 = vunpack.c.l.b16 %v80
  %v129 = vunpack.c.l.b16 %v81
  %v130 = vunpack.c.l.b16 %v82
  %v131 = vunpack.c.l.b16 %v83
  %v132 = vunpack.c.l.b16 %v84
  %v133 = vunpack.c.l.b16 %v85
  %v134 = vunpack.c.l.b16 %v86
  %v135 = vunpack.c.l.b16 %v87
  %v136 = vunpack.c.l.b16 %v88
  %v137 = vunpack.c.l.b16 %v89
  %v138 = vunpack.c.l.b16 %v90
  %v139 = vpack.c.b16 %v124, %v123
  %v140 = vpack.c.b16 %v126, %v125
  %v141 = vpack.c.b16 %v128, %v127
  %v142 = vpack.c.b16 %v130, %v129
  %v143 = vpack.c.b16 %v132, %v131
  %v144 = vpack.c.b16 %v134, %v133
  %v145 = vpack.c.b16 %v136, %v135
  %v146 = vpack.c.b16 %v138, %v137
  %v171 = vunpack.c.l.b16 %v91
  %v172 = vunpack.c.l.b16 %v92
  %v173 = vunpack.c.l.b16 %v93
  %v174 = vunpack.c.l.b16 %v94
  %v175 = vunpack.c.l.b16 %v95
  %v176 = vunpack.c.l.b16 %v96
  %v177 = vunpack.c.l.b16 %v97
  %v178 = vunpack.c.l.b16 %v98
  %v179 = vunpack.c.l.b16 %v99
  %v180 = vunpack.c.l.b16 %v100
  %v181 = vunpack.c.l.b16 %v101
  %v182 = vunpack.c.l.b16 %v102
  %v183 = vunpack.c.l.b16 %v103
  %v184 = vunpack.c.l.b16 %v104
  %v185 = vunpack.c.l.b16 %v105
  %v186 = vunpack.c.l.b16 %v106
  %v187 = vpack.c.b16 %v172, %v171
  %v188 = vpack.c.b16 %v174, %v173
  %v189 = vpack.c.b16 %v176, %v175
  %v190 = vpack.c.b16 %v178, %v177
  %v191 = vpack.c.b16 %v180, %v179
  %v192 = vpack.c.b16 %v182, %v181
  %v193 = vpack.c.b16 %v184, %v183
  %v194 = vpack.c.b16 %v186, %v185
  %203 = vmatpush.bf16.msra.mxu0 %v194
  %204 = vmatpush.bf16.msra.mxu0 %v193
  %205 = vmatpush.bf16.msra.mxu0 %v192
  %206 = vmatpush.bf16.msra.mxu0 %v191
  %207 = vmatpush.bf16.msra.mxu0 %v190
  %208 = vmatpush.bf16.msra.mxu0 %v189
  %209 = vmatpush.bf16.msra.mxu0 %v188
  %210 = vmatpush.bf16.msra.mxu0 %v187
  %211 = vmatmul.bf16.gmra.mxu0 %v139
  %v212 = vpop.f32.mrf.mxu0
  %v213 = vadd.f32 0.0, %v212
  %v214 = vpop.f32.mrf.mxu0
  %v215 = vadd.f32 0.0, %v214
  %216 = vmatmul.bf16.gmra.mxu0 %v140
  %v217 = vpop.f32.mrf.mxu0
  %v218 = vadd.f32 0.0, %v217
  %v219 = vpop.f32.mrf.mxu0
  %v220 = vadd.f32 0.0, %v219
  %221 = vmatmul.bf16.gmra.mxu0 %v141
  %v222 = vpop.f32.mrf.mxu0
  %v223 = vadd.f32 0.0, %v222
  %v224 = vpop.f32.mrf.mxu0
  %v225 = vadd.f32 0.0, %v224
  %226 = vmatmul.bf16.gmra.mxu0 %v142
  %v227 = vpop.f32.mrf.mxu0
  %v228 = vadd.f32 0.0, %v227
  %v229 = vpop.f32.mrf.mxu0
  %v230 = vadd.f32 0.0, %v229
  %231 = vmatmul.bf16.gmra.mxu0 %v143
  %v232 = vpop.f32.mrf.mxu0
  %v233 = vadd.f32 0.0, %v232
  %v234 = vpop.f32.mrf.mxu0
  %v235 = vadd.f32 0.0, %v234
  %236 = vmatmul.bf16.gmra.mxu0 %v144
  %v237 = vpop.f32.mrf.mxu0
  %v238 = vadd.f32 0.0, %v237
  %v239 = vpop.f32.mrf.mxu0
  %v240 = vadd.f32 0.0, %v239
  %241 = vmatmul.bf16.gmra.mxu0 %v145
  %v242 = vpop.f32.mrf.mxu0
  %v243 = vadd.f32 0.0, %v242
  %v244 = vpop.f32.mrf.mxu0
  %v245 = vadd.f32 0.0, %v244
  %246 = vmatmul.bf16.gmra.mxu0 %v146
  %v247 = vpop.f32.mrf.mxu0
  %v248 = vadd.f32 0.0, %v247
  %v249 = vpop.f32.mrf.mxu0
  %v250 = vadd.f32 0.0, %v249
  %251 = vdwg.mxu0
  %v252 = vadd.f32 %v59, %v213
  %v253 = vadd.f32 %v60, %v215
  %v254 = vadd.f32 %v61, %v218
  %v255 = vadd.f32 %v62, %v220
  %v256 = vadd.f32 %v63, %v223
  %v257 = vadd.f32 %v64, %v225
  %v258 = vadd.f32 %v65, %v228
  %v259 = vadd.f32 %v66, %v230
  %v260 = vadd.f32 %v67, %v233
  %v261 = vadd.f32 %v68, %v235
  %v262 = vadd.f32 %v69, %v238
  %v263 = vadd.f32 %v70, %v240
  %v264 = vadd.f32 %v71, %v243
  %v265 = vadd.f32 %v72, %v245
  %v266 = vadd.f32 %v73, %v248
  %v267 = vadd.f32 %v74, %v250
  %268 = vst [vmem:[#allocation2] sm:$0xff] %v252
  %269 = vst [vmem:[#allocation2 + $0x10] sm:$0xff] %v253
  %270 = vst [vmem:[#allocation2 + $0x20] sm:$0xff] %v254
  %271 = vst [vmem:[#allocation2 + $0x30] sm:$0xff] %v255
  %272 = vst [vmem:[#allocation2 + $0x40] sm:$0xff] %v256
  %273 = vst [vmem:[#allocation2 + $0x50] sm:$0xff] %v257
  %274 = vst [vmem:[#allocation2 + $0x60] sm:$0xff] %v258
  %275 = vst [vmem:[#allocation2 + $0x70] sm:$0xff] %v259
  %276 = vst [vmem:[#allocation2 + $0x80] sm:$0xff] %v260
  %277 = vst [vmem:[#allocation2 + $0x90] sm:$0xff] %v261
  %278 = vst [vmem:[#allocation2 + $0xa0] sm:$0xff] %v262
  %279 = vst [vmem:[#allocation2 + $0xb0] sm:$0xff] %v263
  %280 = vst [vmem:[#allocation2 + $0xc0] sm:$0xff] %v264
  %281 = vst [vmem:[#allocation2 + $0xd0] sm:$0xff] %v265
  %282 = vst [vmem:[#allocation2 + $0xe0] sm:$0xff] %v266
  %283 = vst [vmem:[#allocation2 + $0xf0] sm:$0xff] %v267
  // Predicated region
  $region30: #{gnn_forward.2} parent=0 // pred_check
    %p284 = pneg %p23
  $region31: #{gnn_forward.2} parent=0 // pred_check_branch
    %286 = sbr.rel (%p284) target = $region33
  $region32: #{gnn_forward.2} parent=0 // pred_region
    %v287 = vld [vmem:[#allocation2] sm:$0xff]
    %v288 = vld [vmem:[#allocation2 + $0x10] sm:$0xff]
    %v289 = vld [vmem:[#allocation2 + $0x20] sm:$0xff]
    %v290 = vld [vmem:[#allocation2 + $0x30] sm:$0xff]
    %v291 = vld [vmem:[#allocation2 + $0x40] sm:$0xff]
    %v292 = vld [vmem:[#allocation2 + $0x50] sm:$0xff]
    %v293 = vld [vmem:[#allocation2 + $0x60] sm:$0xff]
    %v294 = vld [vmem:[#allocation2 + $0x70] sm:$0xff]
    %v295 = vld [vmem:[#allocation2 + $0x80] sm:$0xff]
    %v296 = vld [vmem:[#allocation2 + $0x90] sm:$0xff]
    %v297 = vld [vmem:[#allocation2 + $0xa0] sm:$0xff]
    %v298 = vld [vmem:[#allocation2 + $0xb0] sm:$0xff]
    %v299 = vld [vmem:[#allocation2 + $0xc0] sm:$0xff]
    %v300 = vld [vmem:[#allocation2 + $0xd0] sm:$0xff]
    %v301 = vld [vmem:[#allocation2 + $0xe0] sm:$0xff]
    %v302 = vld [vmem:[#allocation2 + $0xf0] sm:$0xff]
    %v303 = vld [vmem:[%s3] sm:$0xff]
    %v304 = vld [vmem:[%s3 + $0x8] sm:$0xff]
    %v305 = vld [vmem:[%s3 + $0x10] sm:$0xff]
    %v306 = vld [vmem:[%s3 + $0x18] sm:$0xff]
    %v307 = vld [vmem:[%s3 + $0x20] sm:$0xff]
    %v308 = vld [vmem:[%s3 + $0x28] sm:$0xff]
    %v309 = vld [vmem:[%s3 + $0x30] sm:$0xff]
    %v310 = vld [vmem:[%s3 + $0x38] sm:$0xff]
    %v311 = vld [vmem:[%s3 + $0x40] sm:$0xff]
    %v312 = vld [vmem:[%s3 + $0x48] sm:$0xff]
    %v313 = vld [vmem:[%s3 + $0x50] sm:$0xff]
    %v314 = vld [vmem:[%s3 + $0x58] sm:$0xff]
    %v315 = vld [vmem:[%s3 + $0x60] sm:$0xff]
    %v316 = vld [vmem:[%s3 + $0x68] sm:$0xff]
    %v317 = vld [vmem:[%s3 + $0x70] sm:$0xff]
    %v318 = vld [vmem:[%s3 + $0x78] sm:$0xff]
    %320 = vset.pattern.permute.xlu0 0
    %321 = vperm.xlu0 %320, %v303
    %v322 = vpop.permute.xlu0 %321
    %325 = vset.pattern.permute.xlu0 0
    %326 = vperm.xlu0 %325, %v304
    %v327 = vpop.permute.xlu0 %326
    %330 = vset.pattern.permute.xlu0 0
    %331 = vperm.xlu0 %330, %v305
    %v332 = vpop.permute.xlu0 %331
    %335 = vset.pattern.permute.xlu0 0
    %336 = vperm.xlu0 %335, %v306
    %v337 = vpop.permute.xlu0 %336
    %340 = vset.pattern.permute.xlu0 0
    %341 = vperm.xlu0 %340, %v307
    %v342 = vpop.permute.xlu0 %341
    %345 = vset.pattern.permute.xlu0 0
    %346 = vperm.xlu0 %345, %v308
    %v347 = vpop.permute.xlu0 %346
    %350 = vset.pattern.permute.xlu0 0
    %351 = vperm.xlu0 %350, %v309
    %v352 = vpop.permute.xlu0 %351
    %355 = vset.pattern.permute.xlu0 0
    %356 = vperm.xlu0 %355, %v310
    %v357 = vpop.permute.xlu0 %356
    %360 = vset.pattern.permute.xlu0 0
    %361 = vperm.xlu0 %360, %v311
    %v362 = vpop.permute.xlu0 %361
    %365 = vset.pattern.permute.xlu0 0
    %366 = vperm.xlu0 %365, %v312
    %v367 = vpop.permute.xlu0 %366
    %370 = vset.pattern.permute.xlu0 0
    %371 = vperm.xlu0 %370, %v313
    %v372 = vpop.permute.xlu0 %371
    %375 = vset.pattern.permute.xlu0 0
    %376 = vperm.xlu0 %375, %v314
    %v377 = vpop.permute.xlu0 %376
    %380 = vset.pattern.permute.xlu0 0
    %381 = vperm.xlu0 %380, %v315
    %v382 = vpop.permute.xlu0 %381
    %385 = vset.pattern.permute.xlu0 0
    %386 = vperm.xlu0 %385, %v316
    %v387 = vpop.permute.xlu0 %386
    %390 = vset.pattern.permute.xlu0 0
    %391 = vperm.xlu0 %390, %v317
    %v392 = vpop.permute.xlu0 %391
    %395 = vset.pattern.permute.xlu0 0
    %396 = vperm.xlu0 %395, %v318
    %v397 = vpop.permute.xlu0 %396
    %v399 = vmul.f32 %v287, %v322
    %v400 = vmul.f32 %v288, %v327
    %v401 = vmul.f32 %v289, %v332
    %v402 = vmul.f32 %v290, %v337
    %v403 = vmul.f32 %v291, %v342
    %v404 = vmul.f32 %v292, %v347
    %v405 = vmul.f32 %v293, %v352
    %v406 = vmul.f32 %v294, %v357
    %v407 = vmul.f32 %v295, %v362
    %v408 = vmul.f32 %v296, %v367
    %v409 = vmul.f32 %v297, %v372
    %v410 = vmul.f32 %v298, %v377
    %v411 = vmul.f32 %v299, %v382
    %v412 = vmul.f32 %v300, %v387
    %v413 = vmul.f32 %v301, %v392
    %v414 = vmul.f32 %v302, %v397
    %415 = vst [vmem:[#allocation2] sm:$0xff] %v399
    %416 = vst [vmem:[#allocation2 + $0x10] sm:$0xff] %v400
    %417 = vst [vmem:[#allocation2 + $0x20] sm:$0xff] %v401
    %418 = vst [vmem:[#allocation2 + $0x30] sm:$0xff] %v402
    %419 = vst [vmem:[#allocation2 + $0x40] sm:$0xff] %v403
    %420 = vst [vmem:[#allocation2 + $0x50] sm:$0xff] %v404
    %421 = vst [vmem:[#allocation2 + $0x60] sm:$0xff] %v405
    %422 = vst [vmem:[#allocation2 + $0x70] sm:$0xff] %v406
    %423 = vst [vmem:[#allocation2 + $0x80] sm:$0xff] %v407
    %424 = vst [vmem:[#allocation2 + $0x90] sm:$0xff] %v408
    %425 = vst [vmem:[#allocation2 + $0xa0] sm:$0xff] %v409
    %426 = vst [vmem:[#allocation2 + $0xb0] sm:$0xff] %v410
    %427 = vst [vmem:[#allocation2 + $0xc0] sm:$0xff] %v411
    %428 = vst [vmem:[#allocation2 + $0xd0] sm:$0xff] %v412
    %429 = vst [vmem:[#allocation2 + $0xe0] sm:$0xff] %v413
    %430 = vst [vmem:[#allocation2 + $0xf0] sm:$0xff] %v414
    %v431 = vld [vmem:[%s2] sm:$0xf]
    %v432 = vld [vmem:[%s2 + $0x4] sm:$0xf]
    %v433 = vld [vmem:[%s2 + $0x8] sm:$0xf]
    %v434 = vld [vmem:[%s2 + $0xc] sm:$0xf]
    %v435 = vld [vmem:[%s2 + $0x10] sm:$0xf]
    %v436 = vld [vmem:[%s2 + $0x14] sm:$0xf]
    %v437 = vld [vmem:[%s2 + $0x18] sm:$0xf]
    %v438 = vld [vmem:[%s2 + $0x1c] sm:$0xf]
    %v439 = vld [vmem:[%s2 + $0x20] sm:$0xf]
    %v440 = vld [vmem:[%s2 + $0x24] sm:$0xf]
    %v441 = vld [vmem:[%s2 + $0x28] sm:$0xf]
    %v442 = vld [vmem:[%s2 + $0x2c] sm:$0xf]
    %v443 = vld [vmem:[%s2 + $0x30] sm:$0xf]
    %v444 = vld [vmem:[%s2 + $0x34] sm:$0xf]
    %v445 = vld [vmem:[%s2 + $0x38] sm:$0xf]
    %v446 = vld [vmem:[%s2 + $0x3c] sm:$0xf]
    %v447 = vunpack.c.l.bf16 %v431
    %v448 = vunpack.c.l.bf16 %v432
    %v449 = vunpack.c.l.bf16 %v433
    %v450 = vunpack.c.l.bf16 %v434
    %v451 = vunpack.c.l.bf16 %v435
    %v452 = vunpack.c.l.bf16 %v436
    %v453 = vunpack.c.l.bf16 %v437
    %v454 = vunpack.c.l.bf16 %v438
    %v455 = vunpack.c.l.bf16 %v439
    %v456 = vunpack.c.l.bf16 %v440
    %v457 = vunpack.c.l.bf16 %v441
    %v458 = vunpack.c.l.bf16 %v442
    %v459 = vunpack.c.l.bf16 %v443
    %v460 = vunpack.c.l.bf16 %v444
    %v461 = vunpack.c.l.bf16 %v445
    %v462 = vunpack.c.l.bf16 %v446
    %463 = vst [vmem:[#allocation2 + $0x8] sm:$0xff] %v447
    %464 = vst [vmem:[#allocation2 + $0x18] sm:$0xff] %v448
    %465 = vst [vmem:[#allocation2 + $0x28] sm:$0xff] %v449
    %466 = vst [vmem:[#allocation2 + $0x38] sm:$0xff] %v450
    %467 = vst [vmem:[#allocation2 + $0x48] sm:$0xff] %v451
    %468 = vst [vmem:[#allocation2 + $0x58] sm:$0xff] %v452
    %469 = vst [vmem:[#allocation2 + $0x68] sm:$0xff] %v453
    %470 = vst [vmem:[#allocation2 + $0x78] sm:$0xff] %v454
    %471 = vst [vmem:[#allocation2 + $0x88] sm:$0xff] %v455
    %472 = vst [vmem:[#allocation2 + $0x98] sm:$0xff] %v456
    %473 = vst [vmem:[#allocation2 + $0xa8] sm:$0xff] %v457
    %474 = vst [vmem:[#allocation2 + $0xb8] sm:$0xff] %v458
    %475 = vst [vmem:[#allocation2 + $0xc8] sm:$0xff] %v459
    %476 = vst [vmem:[#allocation2 + $0xd8] sm:$0xff] %v460
    %477 = vst [vmem:[#allocation2 + $0xe8] sm:$0xff] %v461
    %478 = vst [vmem:[#allocation2 + $0xf8] sm:$0xff] %v462
    %v479 = vld [vmem:[#allocation2] sm:$0xff]
    %v480 = vld [vmem:[#allocation2 + $0x8] sm:$0xff]
    %v481 = vld [vmem:[#allocation2 + $0x10] sm:$0xff]
    %v482 = vld [vmem:[#allocation2 + $0x18] sm:$0xff]
    %v483 = vld [vmem:[#allocation2 + $0x20] sm:$0xff]
    %v484 = vld [vmem:[#allocation2 + $0x28] sm:$0xff]
    %v485 = vld [vmem:[#allocation2 + $0x30] sm:$0xff]
    %v486 = vld [vmem:[#allocation2 + $0x38] sm:$0xff]
    %v487 = vld [vmem:[#allocation2 + $0x40] sm:$0xff]
    %v488 = vld [vmem:[#allocation2 + $0x48] sm:$0xff]
    %v489 = vld [vmem:[#allocation2 + $0x50] sm:$0xff]
    %v490 = vld [vmem:[#allocation2 + $0x58] sm:$0xff]
    %v491 = vld [vmem:[#allocation2 + $0x60] sm:$0xff]
    %v492 = vld [vmem:[#allocation2 + $0x68] sm:$0xff]
    %v493 = vld [vmem:[#allocation2 + $0x70] sm:$0xff]
    %v494 = vld [vmem:[#allocation2 + $0x78] sm:$0xff]
    %v495 = vld [vmem:[#allocation2 + $0x80] sm:$0xff]
    %v496 = vld [vmem:[#allocation2 + $0x88] sm:$0xff]
    %v497 = vld [vmem:[#allocation2 + $0x90] sm:$0xff]
    %v498 = vld [vmem:[#allocation2 + $0x98] sm:$0xff]
    %v499 = vld [vmem:[#allocation2 + $0xa0] sm:$0xff]
    %v500 = vld [vmem:[#allocation2 + $0xa8] sm:$0xff]
    %v501 = vld [vmem:[#allocation2 + $0xb0] sm:$0xff]
    %v502 = vld [vmem:[#allocation2 + $0xb8] sm:$0xff]
    %v503 = vld [vmem:[#allocation2 + $0xc0] sm:$0xff]
    %v504 = vld [vmem:[#allocation2 + $0xc8] sm:$0xff]
    %v505 = vld [vmem:[#allocation2 + $0xd0] sm:$0xff]
    %v506 = vld [vmem:[#allocation2 + $0xd8] sm:$0xff]
    %v507 = vld [vmem:[#allocation2 + $0xe0] sm:$0xff]
    %v508 = vld [vmem:[#allocation2 + $0xe8] sm:$0xff]
    %v509 = vld [vmem:[#allocation2 + $0xf0] sm:$0xff]
    %v510 = vld [vmem:[#allocation2 + $0xf8] sm:$0xff]
    %v511 = vpack.c.bf16 %v481, %v479
    %v512 = vpack.c.bf16 %v482, %v480
    %v513 = vpack.c.bf16 %v485, %v483
    %v514 = vpack.c.bf16 %v486, %v484
    %v515 = vpack.c.bf16 %v489, %v487
    %v516 = vpack.c.bf16 %v490, %v488
    %v517 = vpack.c.bf16 %v493, %v491
    %v518 = vpack.c.bf16 %v494, %v492
    %v519 = vpack.c.bf16 %v497, %v495
    %v520 = vpack.c.bf16 %v498, %v496
    %v521 = vpack.c.bf16 %v501, %v499
    %v522 = vpack.c.bf16 %v502, %v500
    %v523 = vpack.c.bf16 %v505, %v503
    %v524 = vpack.c.bf16 %v506, %v504
    %v525 = vpack.c.bf16 %v509, %v507
    %v526 = vpack.c.bf16 %v510, %v508
    %v527 = vld [vmem:[%s4] sm:$0xf]
    %v528 = vld [vmem:[%s4 + $0x4] sm:$0xf]
    %v529 = vld [vmem:[%s4 + $0x8] sm:$0xf]
    %v530 = vld [vmem:[%s4 + $0xc] sm:$0xf]
    %v531 = vld [vmem:[%s4 + $0x10] sm:$0xf]
    %v532 = vld [vmem:[%s4 + $0x14] sm:$0xf]
    %v533 = vld [vmem:[%s4 + $0x18] sm:$0xf]
    %v534 = vld [vmem:[%s4 + $0x1c] sm:$0xf]
    %v535 = vld [vmem:[%s4 + $0x20] sm:$0xf]
    %v536 = vld [vmem:[%s4 + $0x24] sm:$0xf]
    %v537 = vld [vmem:[%s4 + $0x28] sm:$0xf]
    %v538 = vld [vmem:[%s4 + $0x2c] sm:$0xf]
    %v539 = vld [vmem:[%s4 + $0x30] sm:$0xf]
    %v540 = vld [vmem:[%s4 + $0x34] sm:$0xf]
    %v541 = vld [vmem:[%s4 + $0x38] sm:$0xf]
    %v542 = vld [vmem:[%s4 + $0x3c] sm:$0xf]
    %v543 = vld [vmem:[%s4 + $0x40] sm:$0xf]
    %v544 = vld [vmem:[%s4 + $0x44] sm:$0xf]
    %v545 = vld [vmem:[%s4 + $0x48] sm:$0xf]
    %v546 = vld [vmem:[%s4 + $0x4c] sm:$0xf]
    %v547 = vld [vmem:[%s4 + $0x50] sm:$0xf]
    %v548 = vld [vmem:[%s4 + $0x54] sm:$0xf]
    %v549 = vld [vmem:[%s4 + $0x58] sm:$0xf]
    %v550 = vld [vmem:[%s4 + $0x5c] sm:$0xf]
    %v551 = vld [vmem:[%s4 + $0x60] sm:$0xf]
    %v552 = vld [vmem:[%s4 + $0x64] sm:$0xf]
    %v553 = vld [vmem:[%s4 + $0x68] sm:$0xf]
    %v554 = vld [vmem:[%s4 + $0x6c] sm:$0xf]
    %v555 = vld [vmem:[%s4 + $0x70] sm:$0xf]
    %v556 = vld [vmem:[%s4 + $0x74] sm:$0xf]
    %v557 = vld [vmem:[%s4 + $0x78] sm:$0xf]
    %v558 = vld [vmem:[%s4 + $0x7c] sm:$0xf]
    %v559 = vld [vmem:[%s5] sm:$0x1]
    %v561 = vperm.slane %v559, 0
    %v595 = vunpack.c.l.b16 %v527
    %v596 = vunpack.c.l.b16 %v528
    %v597 = vunpack.c.l.b16 %v529
    %v598 = vunpack.c.l.b16 %v530
    %v599 = vunpack.c.l.b16 %v531
    %v600 = vunpack.c.l.b16 %v532
    %v601 = vunpack.c.l.b16 %v533
    %v602 = vunpack.c.l.b16 %v534
    %v603 = vunpack.c.l.b16 %v535
    %v604 = vunpack.c.l.b16 %v536
    %v605 = vunpack.c.l.b16 %v537
    %v606 = vunpack.c.l.b16 %v538
    %v607 = vunpack.c.l.b16 %v539
    %v608 = vunpack.c.l.b16 %v540
    %v609 = vunpack.c.l.b16 %v541
    %v610 = vunpack.c.l.b16 %v542
    %v611 = vunpack.c.l.b16 %v543
    %v612 = vunpack.c.l.b16 %v544
    %v613 = vunpack.c.l.b16 %v545
    %v614 = vunpack.c.l.b16 %v546
    %v615 = vunpack.c.l.b16 %v547
    %v616 = vunpack.c.l.b16 %v548
    %v617 = vunpack.c.l.b16 %v549
    %v618 = vunpack.c.l.b16 %v550
    %v619 = vunpack.c.l.b16 %v551
    %v620 = vunpack.c.l.b16 %v552
    %v621 = vunpack.c.l.b16 %v553
    %v622 = vunpack.c.l.b16 %v554
    %v623 = vunpack.c.l.b16 %v555
    %v624 = vunpack.c.l.b16 %v556
    %v625 = vunpack.c.l.b16 %v557
    %v626 = vunpack.c.l.b16 %v558
    %v627 = vpack.c.b16 %v596, %v595
    %v628 = vpack.c.b16 %v598, %v597
    %v629 = vpack.c.b16 %v600, %v599
    %v630 = vpack.c.b16 %v602, %v601
    %v631 = vpack.c.b16 %v604, %v603
    %v632 = vpack.c.b16 %v606, %v605
    %v633 = vpack.c.b16 %v608, %v607
    %v634 = vpack.c.b16 %v610, %v609
    %v635 = vpack.c.b16 %v612, %v611
    %v636 = vpack.c.b16 %v614, %v613
    %v637 = vpack.c.b16 %v616, %v615
    %v638 = vpack.c.b16 %v618, %v617
    %v639 = vpack.c.b16 %v620, %v619
    %v640 = vpack.c.b16 %v622, %v621
    %v641 = vpack.c.b16 %v624, %v623
    %v642 = vpack.c.b16 %v626, %v625
    %659 = vmatpush.bf16.msra.mxu0 %v634
    %660 = vmatpush.bf16.msra.mxu0 %v633
    %661 = vmatpush.bf16.msra.mxu0 %v632
    %662 = vmatpush.bf16.msra.mxu0 %v631
    %663 = vmatpush.bf16.msra.mxu0 %v630
    %664 = vmatpush.bf16.msra.mxu0 %v629
    %665 = vmatpush.bf16.msra.mxu0 %v628
    %666 = vmatpush.bf16.msra.mxu0 %v627
    %667 = vmatmul.bf16.gmra.mxu0 %v511
    %v668 = vpop.f32.mrf.mxu0
    %v669 = vadd.f32 %v561, %v668
    %v670 = vpop.f32.mrf.mxu0
    %v671 = vadd.f32 %v561, %v670
    %672 = vmatmul.bf16.gmra.mxu0 %v513
    %v673 = vpop.f32.mrf.mxu0
    %v674 = vadd.f32 %v561, %v673
    %v675 = vpop.f32.mrf.mxu0
    %v676 = vadd.f32 %v561, %v675
    %677 = vmatmul.bf16.gmra.mxu0 %v515
    %v678 = vpop.f32.mrf.mxu0
    %v679 = vadd.f32 %v561, %v678
    %v680 = vpop.f32.mrf.mxu0
    %v681 = vadd.f32 %v561, %v680
    %682 = vmatmul.bf16.gmra.mxu0 %v517
    %v683 = vpop.f32.mrf.mxu0
    %v684 = vadd.f32 %v561, %v683
    %v685 = vpop.f32.mrf.mxu0
    %v686 = vadd.f32 %v561, %v685
    %687 = vmatmul.bf16.gmra.mxu0 %v519
    %v688 = vpop.f32.mrf.mxu0
    %v689 = vadd.f32 %v561, %v688
    %v690 = vpop.f32.mrf.mxu0
    %v691 = vadd.f32 %v561, %v690
    %692 = vmatmul.bf16.gmra.mxu0 %v521
    %v693 = vpop.f32.mrf.mxu0
    %v694 = vadd.f32 %v561, %v693
    %v695 = vpop.f32.mrf.mxu0
    %v696 = vadd.f32 %v561, %v695
    %697 = vmatmul.bf16.gmra.mxu0 %v523
    %v698 = vpop.f32.mrf.mxu0
    %v699 = vadd.f32 %v561, %v698
    %v700 = vpop.f32.mrf.mxu0
    %v701 = vadd.f32 %v561, %v700
    %702 = vmatmul.bf16.gmra.mxu0 %v525
    %v703 = vpop.f32.mrf.mxu0
    %v704 = vadd.f32 %v561, %v703
    %v705 = vpop.f32.mrf.mxu0
    %v706 = vadd.f32 %v561, %v705
    %707 = vdwg.mxu0
    %708 = vmatpush.bf16.msra.mxu0 %v642
    %709 = vmatpush.bf16.msra.mxu0 %v641
    %710 = vmatpush.bf16.msra.mxu0 %v640
    %711 = vmatpush.bf16.msra.mxu0 %v639
    %712 = vmatpush.bf16.msra.mxu0 %v638
    %713 = vmatpush.bf16.msra.mxu0 %v637
    %714 = vmatpush.bf16.msra.mxu0 %v636
    %715 = vmatpush.bf16.msra.mxu0 %v635
    %716 = vmatmul.bf16.gmra.mxu0 %v512
    %v717 = vpop.f32.mrf.mxu0
    %v718 = vadd.f32 %v669, %v717
    %v719 = vpop.f32.mrf.mxu0
    %v720 = vadd.f32 %v671, %v719
    %721 = vmatmul.bf16.gmra.mxu0 %v514
    %v722 = vpop.f32.mrf.mxu0
    %v723 = vadd.f32 %v674, %v722
    %v724 = vpop.f32.mrf.mxu0
    %v725 = vadd.f32 %v676, %v724
    %726 = vmatmul.bf16.gmra.mxu0 %v516
    %v727 = vpop.f32.mrf.mxu0
    %v728 = vadd.f32 %v679, %v727
    %v729 = vpop.f32.mrf.mxu0
    %v730 = vadd.f32 %v681, %v729
    %731 = vmatmul.bf16.gmra.mxu0 %v518
    %v732 = vpop.f32.mrf.mxu0
    %v733 = vadd.f32 %v684, %v732
    %v734 = vpop.f32.mrf.mxu0
    %v735 = vadd.f32 %v686, %v734
    %736 = vmatmul.bf16.gmra.mxu0 %v520
    %v737 = vpop.f32.mrf.mxu0
    %v738 = vadd.f32 %v689, %v737
    %v739 = vpop.f32.mrf.mxu0
    %v740 = vadd.f32 %v691, %v739
    %741 = vmatmul.bf16.gmra.mxu0 %v522
    %v742 = vpop.f32.mrf.mxu0
    %v743 = vadd.f32 %v694, %v742
    %v744 = vpop.f32.mrf.mxu0
    %v745 = vadd.f32 %v696, %v744
    %746 = vmatmul.bf16.gmra.mxu0 %v524
    %v747 = vpop.f32.mrf.mxu0
    %v748 = vadd.f32 %v699, %v747
    %v749 = vpop.f32.mrf.mxu0
    %v750 = vadd.f32 %v701, %v749
    %751 = vmatmul.bf16.gmra.mxu0 %v526
    %v752 = vpop.f32.mrf.mxu0
    %v753 = vadd.f32 %v704, %v752
    %v754 = vpop.f32.mrf.mxu0
    %v755 = vadd.f32 %v706, %v754
    %756 = vdwg.mxu0
    %v757 = vmax.f32 %v718, 0.0
    %v758 = vmax.f32 %v720, 0.0
    %v759 = vmax.f32 %v723, 0.0
    %v760 = vmax.f32 %v725, 0.0
    %v761 = vmax.f32 %v728, 0.0
    %v762 = vmax.f32 %v730, 0.0
    %v763 = vmax.f32 %v733, 0.0
    %v764 = vmax.f32 %v735, 0.0
    %v765 = vmax.f32 %v738, 0.0
    %v766 = vmax.f32 %v740, 0.0
    %v767 = vmax.f32 %v743, 0.0
    %v768 = vmax.f32 %v745, 0.0
    %v769 = vmax.f32 %v748, 0.0
    %v770 = vmax.f32 %v750, 0.0
    %v771 = vmax.f32 %v753, 0.0
    %v772 = vmax.f32 %v755, 0.0
    %v773 = vpack.c.bf16 %v757, %v757
    %v774 = vpack.c.bf16 %v758, %v758
    %v775 = vpack.c.bf16 %v759, %v759
    %v776 = vpack.c.bf16 %v760, %v760
    %v777 = vpack.c.bf16 %v761, %v761
    %v778 = vpack.c.bf16 %v762, %v762
    %v779 = vpack.c.bf16 %v763, %v763
    %v780 = vpack.c.bf16 %v764, %v764
    %v781 = vpack.c.bf16 %v765, %v765
    %v782 = vpack.c.bf16 %v766, %v766
    %v783 = vpack.c.bf16 %v767, %v767
    %v784 = vpack.c.bf16 %v768, %v768
    %v785 = vpack.c.bf16 %v769, %v769
    %v786 = vpack.c.bf16 %v770, %v770
    %v787 = vpack.c.bf16 %v771, %v771
    %v788 = vpack.c.bf16 %v772, %v772
    %789 = vst [vmem:[%s6] sm:$0xf] %v773
    %790 = vst [vmem:[%s6 + $0x4] sm:$0xf] %v774
    %791 = vst [vmem:[%s6 + $0x8] sm:$0xf] %v775
    %792 = vst [vmem:[%s6 + $0xc] sm:$0xf] %v776
    %793 = vst [vmem:[%s6 + $0x10] sm:$0xf] %v777
    %794 = vst [vmem:[%s6 + $0x14] sm:$0xf] %v778
    %795 = vst [vmem:[%s6 + $0x18] sm:$0xf] %v779
    %796 = vst [vmem:[%s6 + $0x1c] sm:$0xf] %v780
    %797 = vst [vmem:[%s6 + $0x20] sm:$0xf] %v781
    %798 = vst [vmem:[%s6 + $0x24] sm:$0xf] %v782
    %799 = vst [vmem:[%s6 + $0x28] sm:$0xf] %v783
    %800 = vst [vmem:[%s6 + $0x2c] sm:$0xf] %v784
    %801 = vst [vmem:[%s6 + $0x30] sm:$0xf] %v785
    %802 = vst [vmem:[%s6 + $0x34] sm:$0xf] %v786
    %803 = vst [vmem:[%s6 + $0x38] sm:$0xf] %v787
    %804 = vst [vmem:[%s6 + $0x3c] sm:$0xf] %v788
  $region33: #{gnn_forward.2} parent=0 // pred_fallthru
    _
  // Predicated region
  $region34: #{gnn_forward.2} parent=0 // pred_check
    _
  $region35: #{gnn_forward.2} parent=0 // pred_check_branch
    %806 = sbr.rel (0) target = $region37
  $region36: #{gnn_forward.2} parent=0 // pred_region
    _
  $region37: #{gnn_forward.2} parent=0 // pred_fallthru
    _
  // Predicated region
  $region38: #{gnn_forward.2} parent=0 // pred_check
    _
  $region39: #{gnn_forward.2} parent=0 // pred_check_branch
    %808 = sbr.rel (0) target = $region41
  $region40: #{gnn_forward.2} parent=0 // pred_region
    _
  $region41: #{gnn_forward.2} parent=0 // pred_fallthru
    _

// kernel: gnn_forward.3
$region0: #{gnn_forward.3}
  #allocation0 [shape = 'u32[]', space=smem, size = 0x4, offset = 0x4, fixed_abs, tag = 'smem constant byte address 0x4 - core index']
  #allocation1 [shape = 'u32[72,128]{1,0:T(1,128)}', space=vmem, size = 0x9000, scoped, tag = 'internal scratch']
  #allocation2 [shape = 'f32[128,256]{1,0:T(8,128)}', space=vmem, size = 0x20000, scoped, tag = 'scratch operand']
  %s0 = inlined_call_operand.vmem [shape: bf16[128,128], index: 0, kind: input, shape index: {}]
  %s1 = inlined_call_operand.vmem [shape: bf16[128,128], index: 1, kind: input, shape index: {}, may-alias: {1,2}]
  %s2 = inlined_call_operand.vmem [shape: bf16[128,128], index: 2, kind: input, shape index: {}, may-alias: {1,2}]
  %s3 = inlined_call_operand.vmem [shape: f32[128,1], index: 3, kind: input, shape index: {}]
  %s4 = inlined_call_operand.vmem [shape: bf16[256,128], index: 4, kind: input, shape index: {}]
  %s5 = inlined_call_operand.vmem [shape: f32[1,128], index: 5, kind: input, shape index: {}]
  %s6 = inlined_call_operand.vmem [shape: bf16[128,128], index: 6, kind: input, shape index: {}]
  %s7 = inlined_call_operand.vmem [shape: f32[1,128], index: 7, kind: input, shape index: {}]
  %s8 = inlined_call_operand.vmem [shape: f32[128,128], index: 8, kind: output, shape index: {}]
  %s9 = sld [smem:[#allocation0]]
  $region50: #{gnn_forward.3} parent=0
    _
  %s11 = ssub.s32 1, %s9
  %s12 = scalar_select 0, %s11, %s9
  // Predicated region
  $region2: #{gnn_forward.3} parent=0 // pred_check
    _
  $region3: #{gnn_forward.3} parent=0 // pred_check_branch
    %14 = sbr.rel (0) target = $region5
  $region4: #{gnn_forward.3} parent=0 // pred_region
    _
  $region5: #{gnn_forward.3} parent=0 // pred_fallthru
    _
  // Predicated region
  $region6: #{gnn_forward.3} parent=0 // pred_check
    _
  $region7: #{gnn_forward.3} parent=0 // pred_check_branch
    %16 = sbr.rel (0) target = $region9
  $region8: #{gnn_forward.3} parent=0 // pred_region
    _
  $region9: #{gnn_forward.3} parent=0 // pred_fallthru
    _
  // Predicated region
  $region10: #{gnn_forward.3} parent=0 // pred_check
    _
  $region11: #{gnn_forward.3} parent=0 // pred_check_branch
    %18 = sbr.rel (0) target = $region13
  $region12: #{gnn_forward.3} parent=0 // pred_region
    _
  $region13: #{gnn_forward.3} parent=0 // pred_fallthru
    _
  // Predicated region
  $region14: #{gnn_forward.3} parent=0 // pred_check
    _
  $region15: #{gnn_forward.3} parent=0 // pred_check_branch
    %20 = sbr.rel (0) target = $region17
  $region16: #{gnn_forward.3} parent=0 // pred_region
    _
  $region17: #{gnn_forward.3} parent=0 // pred_fallthru
    _
  // Predicated region
  $region18: #{gnn_forward.3} parent=0 // pred_check
    _
  $region19: #{gnn_forward.3} parent=0 // pred_check_branch
    %22 = sbr.rel (0) target = $region21
  $region20: #{gnn_forward.3} parent=0 // pred_region
    _
  $region21: #{gnn_forward.3} parent=0 // pred_fallthru
    _
  // Predicated region
  $region22: #{gnn_forward.3} parent=0 // pred_check
    _
  $region23: #{gnn_forward.3} parent=0 // pred_check_branch
    %24 = sbr.rel (0) target = $region25
  $region24: #{gnn_forward.3} parent=0 // pred_region
    _
  $region25: #{gnn_forward.3} parent=0 // pred_fallthru
    _
  // Predicated region
  $region26: #{gnn_forward.3} parent=0 // pred_check
    _
  $region27: #{gnn_forward.3} parent=0 // pred_check_branch
    %26 = sbr.rel (0) target = $region29
  $region28: #{gnn_forward.3} parent=0 // pred_region
    _
  $region29: #{gnn_forward.3} parent=0 // pred_fallthru
    _
  // Predicated region
  $region30: #{gnn_forward.3} parent=0 // pred_check
    _
  $region31: #{gnn_forward.3} parent=0 // pred_check_branch
    %28 = sbr.rel (0) target = $region33
  $region32: #{gnn_forward.3} parent=0 // pred_region
    _
  $region33: #{gnn_forward.3} parent=0 // pred_fallthru
    _
  %p29 = scmp.eq.s32.totalorder 0, 0
  // Predicated region
  $region34: #{gnn_forward.3} parent=0 // pred_check
    %p30 = pneg %p29
  $region35: #{gnn_forward.3} parent=0 // pred_check_branch
    %32 = sbr.rel (%p30) target = $region37
  $region36: #{gnn_forward.3} parent=0 // pred_region
    %33 = vst [vmem:[#allocation2] sm:$0xff] 0.0
    %34 = vst [vmem:[#allocation2 + $0x8] sm:$0xff] 0.0
    %35 = vst [vmem:[#allocation2 + $0x10] sm:$0xff] 0.0
    %36 = vst [vmem:[#allocation2 + $0x18] sm:$0xff] 0.0
    %37 = vst [vmem:[#allocation2 + $0x20] sm:$0xff] 0.0
    %38 = vst [vmem:[#allocation2 + $0x28] sm:$0xff] 0.0
    %39 = vst [vmem:[#allocation2 + $0x30] sm:$0xff] 0.0
    %40 = vst [vmem:[#allocation2 + $0x38] sm:$0xff] 0.0
    %41 = vst [vmem:[#allocation2 + $0x40] sm:$0xff] 0.0
    %42 = vst [vmem:[#allocation2 + $0x48] sm:$0xff] 0.0
    %43 = vst [vmem:[#allocation2 + $0x50] sm:$0xff] 0.0
    %44 = vst [vmem:[#allocation2 + $0x58] sm:$0xff] 0.0
    %45 = vst [vmem:[#allocation2 + $0x60] sm:$0xff] 0.0
    %46 = vst [vmem:[#allocation2 + $0x68] sm:$0xff] 0.0
    %47 = vst [vmem:[#allocation2 + $0x70] sm:$0xff] 0.0
    %48 = vst [vmem:[#allocation2 + $0x78] sm:$0xff] 0.0
    %49 = vst [vmem:[#allocation2 + $0x80] sm:$0xff] 0.0
    %50 = vst [vmem:[#allocation2 + $0x88] sm:$0xff] 0.0
    %51 = vst [vmem:[#allocation2 + $0x90] sm:$0xff] 0.0
    %52 = vst [vmem:[#allocation2 + $0x98] sm:$0xff] 0.0
    %53 = vst [vmem:[#allocation2 + $0xa0] sm:$0xff] 0.0
    %54 = vst [vmem:[#allocation2 + $0xa8] sm:$0xff] 0.0
    %55 = vst [vmem:[#allocation2 + $0xb0] sm:$0xff] 0.0
    %56 = vst [vmem:[#allocation2 + $0xb8] sm:$0xff] 0.0
    %57 = vst [vmem:[#allocation2 + $0xc0] sm:$0xff] 0.0
    %58 = vst [vmem:[#allocation2 + $0xc8] sm:$0xff] 0.0
    %59 = vst [vmem:[#allocation2 + $0xd0] sm:$0xff] 0.0
    %60 = vst [vmem:[#allocation2 + $0xd8] sm:$0xff] 0.0
    %61 = vst [vmem:[#allocation2 + $0xe0] sm:$0xff] 0.0
    %62 = vst [vmem:[#allocation2 + $0xe8] sm:$0xff] 0.0
    %63 = vst [vmem:[#allocation2 + $0xf0] sm:$0xff] 0.0
    %64 = vst [vmem:[#allocation2 + $0xf8] sm:$0xff] 0.0
  $region37: #{gnn_forward.3} parent=0 // pred_fallthru
    _
  %v65 = vld [vmem:[#allocation2] sm:$0xff]
  %v66 = vld [vmem:[#allocation2 + $0x10] sm:$0xff]
  %v67 = vld [vmem:[#allocation2 + $0x20] sm:$0xff]
  %v68 = vld [vmem:[#allocation2 + $0x30] sm:$0xff]
  %v69 = vld [vmem:[#allocation2 + $0x40] sm:$0xff]
  %v70 = vld [vmem:[#allocation2 + $0x50] sm:$0xff]
  %v71 = vld [vmem:[#allocation2 + $0x60] sm:$0xff]
  %v72 = vld [vmem:[#allocation2 + $0x70] sm:$0xff]
  %v73 = vld [vmem:[#allocation2 + $0x80] sm:$0xff]
  %v74 = vld [vmem:[#allocation2 + $0x90] sm:$0xff]
  %v75 = vld [vmem:[#allocation2 + $0xa0] sm:$0xff]
  %v76 = vld [vmem:[#allocation2 + $0xb0] sm:$0xff]
  %v77 = vld [vmem:[#allocation2 + $0xc0] sm:$0xff]
  %v78 = vld [vmem:[#allocation2 + $0xd0] sm:$0xff]
  %v79 = vld [vmem:[#allocation2 + $0xe0] sm:$0xff]
  %v80 = vld [vmem:[#allocation2 + $0xf0] sm:$0xff]
  %v81 = vld [vmem:[%s0] sm:$0xf]
  %v82 = vld [vmem:[%s0 + $0x4] sm:$0xf]
  %v83 = vld [vmem:[%s0 + $0x8] sm:$0xf]
  %v84 = vld [vmem:[%s0 + $0xc] sm:$0xf]
  %v85 = vld [vmem:[%s0 + $0x10] sm:$0xf]
  %v86 = vld [vmem:[%s0 + $0x14] sm:$0xf]
  %v87 = vld [vmem:[%s0 + $0x18] sm:$0xf]
  %v88 = vld [vmem:[%s0 + $0x1c] sm:$0xf]
  %v89 = vld [vmem:[%s0 + $0x20] sm:$0xf]
  %v90 = vld [vmem:[%s0 + $0x24] sm:$0xf]
  %v91 = vld [vmem:[%s0 + $0x28] sm:$0xf]
  %v92 = vld [vmem:[%s0 + $0x2c] sm:$0xf]
  %v93 = vld [vmem:[%s0 + $0x30] sm:$0xf]
  %v94 = vld [vmem:[%s0 + $0x34] sm:$0xf]
  %v95 = vld [vmem:[%s0 + $0x38] sm:$0xf]
  %v96 = vld [vmem:[%s0 + $0x3c] sm:$0xf]
  %v97 = vld [vmem:[%s1] sm:$0xf]
  %v98 = vld [vmem:[%s1 + $0x4] sm:$0xf]
  %v99 = vld [vmem:[%s1 + $0x8] sm:$0xf]
  %v100 = vld [vmem:[%s1 + $0xc] sm:$0xf]
  %v101 = vld [vmem:[%s1 + $0x10] sm:$0xf]
  %v102 = vld [vmem:[%s1 + $0x14] sm:$0xf]
  %v103 = vld [vmem:[%s1 + $0x18] sm:$0xf]
  %v104 = vld [vmem:[%s1 + $0x1c] sm:$0xf]
  %v105 = vld [vmem:[%s1 + $0x20] sm:$0xf]
  %v106 = vld [vmem:[%s1 + $0x24] sm:$0xf]
  %v107 = vld [vmem:[%s1 + $0x28] sm:$0xf]
  %v108 = vld [vmem:[%s1 + $0x2c] sm:$0xf]
  %v109 = vld [vmem:[%s1 + $0x30] sm:$0xf]
  %v110 = vld [vmem:[%s1 + $0x34] sm:$0xf]
  %v111 = vld [vmem:[%s1 + $0x38] sm:$0xf]
  %v112 = vld [vmem:[%s1 + $0x3c] sm:$0xf]
  %v129 = vunpack.c.l.b16 %v81
  %v130 = vunpack.c.l.b16 %v82
  %v131 = vunpack.c.l.b16 %v83
  %v132 = vunpack.c.l.b16 %v84
  %v133 = vunpack.c.l.b16 %v85
  %v134 = vunpack.c.l.b16 %v86
  %v135 = vunpack.c.l.b16 %v87
  %v136 = vunpack.c.l.b16 %v88
  %v137 = vunpack.c.l.b16 %v89
  %v138 = vunpack.c.l.b16 %v90
  %v139 = vunpack.c.l.b16 %v91
  %v140 = vunpack.c.l.b16 %v92
  %v141 = vunpack.c.l.b16 %v93
  %v142 = vunpack.c.l.b16 %v94
  %v143 = vunpack.c.l.b16 %v95
  %v144 = vunpack.c.l.b16 %v96
  %v145 = vpack.c.b16 %v130, %v129
  %v146 = vpack.c.b16 %v132, %v131
  %v147 = vpack.c.b16 %v134, %v133
  %v148 = vpack.c.b16 %v136, %v135
  %v149 = vpack.c.b16 %v138, %v137
  %v150 = vpack.c.b16 %v140, %v139
  %v151 = vpack.c.b16 %v142, %v141
  %v152 = vpack.c.b16 %v144, %v143
  %v177 = vunpack.c.l.b16 %v97
  %v178 = vunpack.c.l.b16 %v98
  %v179 = vunpack.c.l.b16 %v99
  %v180 = vunpack.c.l.b16 %v100
  %v181 = vunpack.c.l.b16 %v101
  %v182 = vunpack.c.l.b16 %v102
  %v183 = vunpack.c.l.b16 %v103
  %v184 = vunpack.c.l.b16 %v104
  %v185 = vunpack.c.l.b16 %v105
  %v186 = vunpack.c.l.b16 %v106
  %v187 = vunpack.c.l.b16 %v107
  %v188 = vunpack.c.l.b16 %v108
  %v189 = vunpack.c.l.b16 %v109
  %v190 = vunpack.c.l.b16 %v110
  %v191 = vunpack.c.l.b16 %v111
  %v192 = vunpack.c.l.b16 %v112
  %v193 = vpack.c.b16 %v178, %v177
  %v194 = vpack.c.b16 %v180, %v179
  %v195 = vpack.c.b16 %v182, %v181
  %v196 = vpack.c.b16 %v184, %v183
  %v197 = vpack.c.b16 %v186, %v185
  %v198 = vpack.c.b16 %v188, %v187
  %v199 = vpack.c.b16 %v190, %v189
  %v200 = vpack.c.b16 %v192, %v191
  %209 = vmatpush.bf16.msra.mxu0 %v200
  %210 = vmatpush.bf16.msra.mxu0 %v199
  %211 = vmatpush.bf16.msra.mxu0 %v198
  %212 = vmatpush.bf16.msra.mxu0 %v197
  %213 = vmatpush.bf16.msra.mxu0 %v196
  %214 = vmatpush.bf16.msra.mxu0 %v195
  %215 = vmatpush.bf16.msra.mxu0 %v194
  %216 = vmatpush.bf16.msra.mxu0 %v193
  %217 = vmatmul.bf16.gmra.mxu0 %v145
  %v218 = vpop.f32.mrf.mxu0
  %v219 = vadd.f32 0.0, %v218
  %v220 = vpop.f32.mrf.mxu0
  %v221 = vadd.f32 0.0, %v220
  %222 = vmatmul.bf16.gmra.mxu0 %v146
  %v223 = vpop.f32.mrf.mxu0
  %v224 = vadd.f32 0.0, %v223
  %v225 = vpop.f32.mrf.mxu0
  %v226 = vadd.f32 0.0, %v225
  %227 = vmatmul.bf16.gmra.mxu0 %v147
  %v228 = vpop.f32.mrf.mxu0
  %v229 = vadd.f32 0.0, %v228
  %v230 = vpop.f32.mrf.mxu0
  %v231 = vadd.f32 0.0, %v230
  %232 = vmatmul.bf16.gmra.mxu0 %v148
  %v233 = vpop.f32.mrf.mxu0
  %v234 = vadd.f32 0.0, %v233
  %v235 = vpop.f32.mrf.mxu0
  %v236 = vadd.f32 0.0, %v235
  %237 = vmatmul.bf16.gmra.mxu0 %v149
  %v238 = vpop.f32.mrf.mxu0
  %v239 = vadd.f32 0.0, %v238
  %v240 = vpop.f32.mrf.mxu0
  %v241 = vadd.f32 0.0, %v240
  %242 = vmatmul.bf16.gmra.mxu0 %v150
  %v243 = vpop.f32.mrf.mxu0
  %v244 = vadd.f32 0.0, %v243
  %v245 = vpop.f32.mrf.mxu0
  %v246 = vadd.f32 0.0, %v245
  %247 = vmatmul.bf16.gmra.mxu0 %v151
  %v248 = vpop.f32.mrf.mxu0
  %v249 = vadd.f32 0.0, %v248
  %v250 = vpop.f32.mrf.mxu0
  %v251 = vadd.f32 0.0, %v250
  %252 = vmatmul.bf16.gmra.mxu0 %v152
  %v253 = vpop.f32.mrf.mxu0
  %v254 = vadd.f32 0.0, %v253
  %v255 = vpop.f32.mrf.mxu0
  %v256 = vadd.f32 0.0, %v255
  %257 = vdwg.mxu0
  %v258 = vadd.f32 %v65, %v219
  %v259 = vadd.f32 %v66, %v221
  %v260 = vadd.f32 %v67, %v224
  %v261 = vadd.f32 %v68, %v226
  %v262 = vadd.f32 %v69, %v229
  %v263 = vadd.f32 %v70, %v231
  %v264 = vadd.f32 %v71, %v234
  %v265 = vadd.f32 %v72, %v236
  %v266 = vadd.f32 %v73, %v239
  %v267 = vadd.f32 %v74, %v241
  %v268 = vadd.f32 %v75, %v244
  %v269 = vadd.f32 %v76, %v246
  %v270 = vadd.f32 %v77, %v249
  %v271 = vadd.f32 %v78, %v251
  %v272 = vadd.f32 %v79, %v254
  %v273 = vadd.f32 %v80, %v256
  %274 = vst [vmem:[#allocation2] sm:$0xff] %v258
  %275 = vst [vmem:[#allocation2 + $0x10] sm:$0xff] %v259
  %276 = vst [vmem:[#allocation2 + $0x20] sm:$0xff] %v260
  %277 = vst [vmem:[#allocation2 + $0x30] sm:$0xff] %v261
  %278 = vst [vmem:[#allocation2 + $0x40] sm:$0xff] %v262
  %279 = vst [vmem:[#allocation2 + $0x50] sm:$0xff] %v263
  %280 = vst [vmem:[#allocation2 + $0x60] sm:$0xff] %v264
  %281 = vst [vmem:[#allocation2 + $0x70] sm:$0xff] %v265
  %282 = vst [vmem:[#allocation2 + $0x80] sm:$0xff] %v266
  %283 = vst [vmem:[#allocation2 + $0x90] sm:$0xff] %v267
  %284 = vst [vmem:[#allocation2 + $0xa0] sm:$0xff] %v268
  %285 = vst [vmem:[#allocation2 + $0xb0] sm:$0xff] %v269
  %286 = vst [vmem:[#allocation2 + $0xc0] sm:$0xff] %v270
  %287 = vst [vmem:[#allocation2 + $0xd0] sm:$0xff] %v271
  %288 = vst [vmem:[#allocation2 + $0xe0] sm:$0xff] %v272
  %289 = vst [vmem:[#allocation2 + $0xf0] sm:$0xff] %v273
  // Predicated region
  $region38: #{gnn_forward.3} parent=0 // pred_check
    %p290 = pneg %p29
  $region39: #{gnn_forward.3} parent=0 // pred_check_branch
    %292 = sbr.rel (%p290) target = $region41
  $region40: #{gnn_forward.3} parent=0 // pred_region
    %v293 = vld [vmem:[#allocation2] sm:$0xff]
    %v294 = vld [vmem:[#allocation2 + $0x10] sm:$0xff]
    %v295 = vld [vmem:[#allocation2 + $0x20] sm:$0xff]
    %v296 = vld [vmem:[#allocation2 + $0x30] sm:$0xff]
    %v297 = vld [vmem:[#allocation2 + $0x40] sm:$0xff]
    %v298 = vld [vmem:[#allocation2 + $0x50] sm:$0xff]
    %v299 = vld [vmem:[#allocation2 + $0x60] sm:$0xff]
    %v300 = vld [vmem:[#allocation2 + $0x70] sm:$0xff]
    %v301 = vld [vmem:[#allocation2 + $0x80] sm:$0xff]
    %v302 = vld [vmem:[#allocation2 + $0x90] sm:$0xff]
    %v303 = vld [vmem:[#allocation2 + $0xa0] sm:$0xff]
    %v304 = vld [vmem:[#allocation2 + $0xb0] sm:$0xff]
    %v305 = vld [vmem:[#allocation2 + $0xc0] sm:$0xff]
    %v306 = vld [vmem:[#allocation2 + $0xd0] sm:$0xff]
    %v307 = vld [vmem:[#allocation2 + $0xe0] sm:$0xff]
    %v308 = vld [vmem:[#allocation2 + $0xf0] sm:$0xff]
    %v309 = vld [vmem:[%s3] sm:$0xff]
    %v310 = vld [vmem:[%s3 + $0x8] sm:$0xff]
    %v311 = vld [vmem:[%s3 + $0x10] sm:$0xff]
    %v312 = vld [vmem:[%s3 + $0x18] sm:$0xff]
    %v313 = vld [vmem:[%s3 + $0x20] sm:$0xff]
    %v314 = vld [vmem:[%s3 + $0x28] sm:$0xff]
    %v315 = vld [vmem:[%s3 + $0x30] sm:$0xff]
    %v316 = vld [vmem:[%s3 + $0x38] sm:$0xff]
    %v317 = vld [vmem:[%s3 + $0x40] sm:$0xff]
    %v318 = vld [vmem:[%s3 + $0x48] sm:$0xff]
    %v319 = vld [vmem:[%s3 + $0x50] sm:$0xff]
    %v320 = vld [vmem:[%s3 + $0x58] sm:$0xff]
    %v321 = vld [vmem:[%s3 + $0x60] sm:$0xff]
    %v322 = vld [vmem:[%s3 + $0x68] sm:$0xff]
    %v323 = vld [vmem:[%s3 + $0x70] sm:$0xff]
    %v324 = vld [vmem:[%s3 + $0x78] sm:$0xff]
    %326 = vset.pattern.permute.xlu0 0
    %327 = vperm.xlu0 %326, %v309
    %v328 = vpop.permute.xlu0 %327
    %331 = vset.pattern.permute.xlu0 0
    %332 = vperm.xlu0 %331, %v310
    %v333 = vpop.permute.xlu0 %332
    %336 = vset.pattern.permute.xlu0 0
    %337 = vperm.xlu0 %336, %v311
    %v338 = vpop.permute.xlu0 %337
    %341 = vset.pattern.permute.xlu0 0
    %342 = vperm.xlu0 %341, %v312
    %v343 = vpop.permute.xlu0 %342
    %346 = vset.pattern.permute.xlu0 0
    %347 = vperm.xlu0 %346, %v313
    %v348 = vpop.permute.xlu0 %347
    %351 = vset.pattern.permute.xlu0 0
    %352 = vperm.xlu0 %351, %v314
    %v353 = vpop.permute.xlu0 %352
    %356 = vset.pattern.permute.xlu0 0
    %357 = vperm.xlu0 %356, %v315
    %v358 = vpop.permute.xlu0 %357
    %361 = vset.pattern.permute.xlu0 0
    %362 = vperm.xlu0 %361, %v316
    %v363 = vpop.permute.xlu0 %362
    %366 = vset.pattern.permute.xlu0 0
    %367 = vperm.xlu0 %366, %v317
    %v368 = vpop.permute.xlu0 %367
    %371 = vset.pattern.permute.xlu0 0
    %372 = vperm.xlu0 %371, %v318
    %v373 = vpop.permute.xlu0 %372
    %376 = vset.pattern.permute.xlu0 0
    %377 = vperm.xlu0 %376, %v319
    %v378 = vpop.permute.xlu0 %377
    %381 = vset.pattern.permute.xlu0 0
    %382 = vperm.xlu0 %381, %v320
    %v383 = vpop.permute.xlu0 %382
    %386 = vset.pattern.permute.xlu0 0
    %387 = vperm.xlu0 %386, %v321
    %v388 = vpop.permute.xlu0 %387
    %391 = vset.pattern.permute.xlu0 0
    %392 = vperm.xlu0 %391, %v322
    %v393 = vpop.permute.xlu0 %392
    %396 = vset.pattern.permute.xlu0 0
    %397 = vperm.xlu0 %396, %v323
    %v398 = vpop.permute.xlu0 %397
    %401 = vset.pattern.permute.xlu0 0
    %402 = vperm.xlu0 %401, %v324
    %v403 = vpop.permute.xlu0 %402
    %v405 = vmul.f32 %v293, %v328
    %v406 = vmul.f32 %v294, %v333
    %v407 = vmul.f32 %v295, %v338
    %v408 = vmul.f32 %v296, %v343
    %v409 = vmul.f32 %v297, %v348
    %v410 = vmul.f32 %v298, %v353
    %v411 = vmul.f32 %v299, %v358
    %v412 = vmul.f32 %v300, %v363
    %v413 = vmul.f32 %v301, %v368
    %v414 = vmul.f32 %v302, %v373
    %v415 = vmul.f32 %v303, %v378
    %v416 = vmul.f32 %v304, %v383
    %v417 = vmul.f32 %v305, %v388
    %v418 = vmul.f32 %v306, %v393
    %v419 = vmul.f32 %v307, %v398
    %v420 = vmul.f32 %v308, %v403
    %421 = vst [vmem:[#allocation2] sm:$0xff] %v405
    %422 = vst [vmem:[#allocation2 + $0x10] sm:$0xff] %v406
    %423 = vst [vmem:[#allocation2 + $0x20] sm:$0xff] %v407
    %424 = vst [vmem:[#allocation2 + $0x30] sm:$0xff] %v408
    %425 = vst [vmem:[#allocation2 + $0x40] sm:$0xff] %v409
    %426 = vst [vmem:[#allocation2 + $0x50] sm:$0xff] %v410
    %427 = vst [vmem:[#allocation2 + $0x60] sm:$0xff] %v411
    %428 = vst [vmem:[#allocation2 + $0x70] sm:$0xff] %v412
    %429 = vst [vmem:[#allocation2 + $0x80] sm:$0xff] %v413
    %430 = vst [vmem:[#allocation2 + $0x90] sm:$0xff] %v414
    %431 = vst [vmem:[#allocation2 + $0xa0] sm:$0xff] %v415
    %432 = vst [vmem:[#allocation2 + $0xb0] sm:$0xff] %v416
    %433 = vst [vmem:[#allocation2 + $0xc0] sm:$0xff] %v417
    %434 = vst [vmem:[#allocation2 + $0xd0] sm:$0xff] %v418
    %435 = vst [vmem:[#allocation2 + $0xe0] sm:$0xff] %v419
    %436 = vst [vmem:[#allocation2 + $0xf0] sm:$0xff] %v420
    %v437 = vld [vmem:[%s2] sm:$0xf]
    %v438 = vld [vmem:[%s2 + $0x4] sm:$0xf]
    %v439 = vld [vmem:[%s2 + $0x8] sm:$0xf]
    %v440 = vld [vmem:[%s2 + $0xc] sm:$0xf]
    %v441 = vld [vmem:[%s2 + $0x10] sm:$0xf]
    %v442 = vld [vmem:[%s2 + $0x14] sm:$0xf]
    %v443 = vld [vmem:[%s2 + $0x18] sm:$0xf]
    %v444 = vld [vmem:[%s2 + $0x1c] sm:$0xf]
    %v445 = vld [vmem:[%s2 + $0x20] sm:$0xf]
    %v446 = vld [vmem:[%s2 + $0x24] sm:$0xf]
    %v447 = vld [vmem:[%s2 + $0x28] sm:$0xf]
    %v448 = vld [vmem:[%s2 + $0x2c] sm:$0xf]
    %v449 = vld [vmem:[%s2 + $0x30] sm:$0xf]
    %v450 = vld [vmem:[%s2 + $0x34] sm:$0xf]
    %v451 = vld [vmem:[%s2 + $0x38] sm:$0xf]
    %v452 = vld [vmem:[%s2 + $0x3c] sm:$0xf]
    %v453 = vunpack.c.l.bf16 %v437
    %v454 = vunpack.c.l.bf16 %v438
    %v455 = vunpack.c.l.bf16 %v439
    %v456 = vunpack.c.l.bf16 %v440
    %v457 = vunpack.c.l.bf16 %v441
    %v458 = vunpack.c.l.bf16 %v442
    %v459 = vunpack.c.l.bf16 %v443
    %v460 = vunpack.c.l.bf16 %v444
    %v461 = vunpack.c.l.bf16 %v445
    %v462 = vunpack.c.l.bf16 %v446
    %v463 = vunpack.c.l.bf16 %v447
    %v464 = vunpack.c.l.bf16 %v448
    %v465 = vunpack.c.l.bf16 %v449
    %v466 = vunpack.c.l.bf16 %v450
    %v467 = vunpack.c.l.bf16 %v451
    %v468 = vunpack.c.l.bf16 %v452
    %469 = vst [vmem:[#allocation2 + $0x8] sm:$0xff] %v453
    %470 = vst [vmem:[#allocation2 + $0x18] sm:$0xff] %v454
    %471 = vst [vmem:[#allocation2 + $0x28] sm:$0xff] %v455
    %472 = vst [vmem:[#allocation2 + $0x38] sm:$0xff] %v456
    %473 = vst [vmem:[#allocation2 + $0x48] sm:$0xff] %v457
    %474 = vst [vmem:[#allocation2 + $0x58] sm:$0xff] %v458
    %475 = vst [vmem:[#allocation2 + $0x68] sm:$0xff] %v459
    %476 = vst [vmem:[#allocation2 + $0x78] sm:$0xff] %v460
    %477 = vst [vmem:[#allocation2 + $0x88] sm:$0xff] %v461
    %478 = vst [vmem:[#allocation2 + $0x98] sm:$0xff] %v462
    %479 = vst [vmem:[#allocation2 + $0xa8] sm:$0xff] %v463
    %480 = vst [vmem:[#allocation2 + $0xb8] sm:$0xff] %v464
    %481 = vst [vmem:[#allocation2 + $0xc8] sm:$0xff] %v465
    %482 = vst [vmem:[#allocation2 + $0xd8] sm:$0xff] %v466
    %483 = vst [vmem:[#allocation2 + $0xe8] sm:$0xff] %v467
    %484 = vst [vmem:[#allocation2 + $0xf8] sm:$0xff] %v468
    %v485 = vld [vmem:[#allocation2] sm:$0xff]
    %v486 = vld [vmem:[#allocation2 + $0x8] sm:$0xff]
    %v487 = vld [vmem:[#allocation2 + $0x10] sm:$0xff]
    %v488 = vld [vmem:[#allocation2 + $0x18] sm:$0xff]
    %v489 = vld [vmem:[#allocation2 + $0x20] sm:$0xff]
    %v490 = vld [vmem:[#allocation2 + $0x28] sm:$0xff]
    %v491 = vld [vmem:[#allocation2 + $0x30] sm:$0xff]
    %v492 = vld [vmem:[#allocation2 + $0x38] sm:$0xff]
    %v493 = vld [vmem:[#allocation2 + $0x40] sm:$0xff]
    %v494 = vld [vmem:[#allocation2 + $0x48] sm:$0xff]
    %v495 = vld [vmem:[#allocation2 + $0x50] sm:$0xff]
    %v496 = vld [vmem:[#allocation2 + $0x58] sm:$0xff]
    %v497 = vld [vmem:[#allocation2 + $0x60] sm:$0xff]
    %v498 = vld [vmem:[#allocation2 + $0x68] sm:$0xff]
    %v499 = vld [vmem:[#allocation2 + $0x70] sm:$0xff]
    %v500 = vld [vmem:[#allocation2 + $0x78] sm:$0xff]
    %v501 = vld [vmem:[#allocation2 + $0x80] sm:$0xff]
    %v502 = vld [vmem:[#allocation2 + $0x88] sm:$0xff]
    %v503 = vld [vmem:[#allocation2 + $0x90] sm:$0xff]
    %v504 = vld [vmem:[#allocation2 + $0x98] sm:$0xff]
    %v505 = vld [vmem:[#allocation2 + $0xa0] sm:$0xff]
    %v506 = vld [vmem:[#allocation2 + $0xa8] sm:$0xff]
    %v507 = vld [vmem:[#allocation2 + $0xb0] sm:$0xff]
    %v508 = vld [vmem:[#allocation2 + $0xb8] sm:$0xff]
    %v509 = vld [vmem:[#allocation2 + $0xc0] sm:$0xff]
    %v510 = vld [vmem:[#allocation2 + $0xc8] sm:$0xff]
    %v511 = vld [vmem:[#allocation2 + $0xd0] sm:$0xff]
    %v512 = vld [vmem:[#allocation2 + $0xd8] sm:$0xff]
    %v513 = vld [vmem:[#allocation2 + $0xe0] sm:$0xff]
    %v514 = vld [vmem:[#allocation2 + $0xe8] sm:$0xff]
    %v515 = vld [vmem:[#allocation2 + $0xf0] sm:$0xff]
    %v516 = vld [vmem:[#allocation2 + $0xf8] sm:$0xff]
    %v517 = vpack.c.bf16 %v487, %v485
    %v518 = vpack.c.bf16 %v488, %v486
    %v519 = vpack.c.bf16 %v491, %v489
    %v520 = vpack.c.bf16 %v492, %v490
    %v521 = vpack.c.bf16 %v495, %v493
    %v522 = vpack.c.bf16 %v496, %v494
    %v523 = vpack.c.bf16 %v499, %v497
    %v524 = vpack.c.bf16 %v500, %v498
    %v525 = vpack.c.bf16 %v503, %v501
    %v526 = vpack.c.bf16 %v504, %v502
    %v527 = vpack.c.bf16 %v507, %v505
    %v528 = vpack.c.bf16 %v508, %v506
    %v529 = vpack.c.bf16 %v511, %v509
    %v530 = vpack.c.bf16 %v512, %v510
    %v531 = vpack.c.bf16 %v515, %v513
    %v532 = vpack.c.bf16 %v516, %v514
    %v533 = vld [vmem:[%s4] sm:$0xf]
    %v534 = vld [vmem:[%s4 + $0x4] sm:$0xf]
    %v535 = vld [vmem:[%s4 + $0x8] sm:$0xf]
    %v536 = vld [vmem:[%s4 + $0xc] sm:$0xf]
    %v537 = vld [vmem:[%s4 + $0x10] sm:$0xf]
    %v538 = vld [vmem:[%s4 + $0x14] sm:$0xf]
    %v539 = vld [vmem:[%s4 + $0x18] sm:$0xf]
    %v540 = vld [vmem:[%s4 + $0x1c] sm:$0xf]
    %v541 = vld [vmem:[%s4 + $0x20] sm:$0xf]
    %v542 = vld [vmem:[%s4 + $0x24] sm:$0xf]
    %v543 = vld [vmem:[%s4 + $0x28] sm:$0xf]
    %v544 = vld [vmem:[%s4 + $0x2c] sm:$0xf]
    %v545 = vld [vmem:[%s4 + $0x30] sm:$0xf]
    %v546 = vld [vmem:[%s4 + $0x34] sm:$0xf]
    %v547 = vld [vmem:[%s4 + $0x38] sm:$0xf]
    %v548 = vld [vmem:[%s4 + $0x3c] sm:$0xf]
    %v549 = vld [vmem:[%s4 + $0x40] sm:$0xf]
    %v550 = vld [vmem:[%s4 + $0x44] sm:$0xf]
    %v551 = vld [vmem:[%s4 + $0x48] sm:$0xf]
    %v552 = vld [vmem:[%s4 + $0x4c] sm:$0xf]
    %v553 = vld [vmem:[%s4 + $0x50] sm:$0xf]
    %v554 = vld [vmem:[%s4 + $0x54] sm:$0xf]
    %v555 = vld [vmem:[%s4 + $0x58] sm:$0xf]
    %v556 = vld [vmem:[%s4 + $0x5c] sm:$0xf]
    %v557 = vld [vmem:[%s4 + $0x60] sm:$0xf]
    %v558 = vld [vmem:[%s4 + $0x64] sm:$0xf]
    %v559 = vld [vmem:[%s4 + $0x68] sm:$0xf]
    %v560 = vld [vmem:[%s4 + $0x6c] sm:$0xf]
    %v561 = vld [vmem:[%s4 + $0x70] sm:$0xf]
    %v562 = vld [vmem:[%s4 + $0x74] sm:$0xf]
    %v563 = vld [vmem:[%s4 + $0x78] sm:$0xf]
    %v564 = vld [vmem:[%s4 + $0x7c] sm:$0xf]
    %v565 = vld [vmem:[%s5] sm:$0x1]
    %v567 = vperm.slane %v565, 0
    %v601 = vunpack.c.l.b16 %v533
    %v602 = vunpack.c.l.b16 %v534
    %v603 = vunpack.c.l.b16 %v535
    %v604 = vunpack.c.l.b16 %v536
    %v605 = vunpack.c.l.b16 %v537
    %v606 = vunpack.c.l.b16 %v538
    %v607 = vunpack.c.l.b16 %v539
    %v608 = vunpack.c.l.b16 %v540
    %v609 = vunpack.c.l.b16 %v541
    %v610 = vunpack.c.l.b16 %v542
    %v611 = vunpack.c.l.b16 %v543
    %v612 = vunpack.c.l.b16 %v544
    %v613 = vunpack.c.l.b16 %v545
    %v614 = vunpack.c.l.b16 %v546
    %v615 = vunpack.c.l.b16 %v547
    %v616 = vunpack.c.l.b16 %v548
    %v617 = vunpack.c.l.b16 %v549
    %v618 = vunpack.c.l.b16 %v550
    %v619 = vunpack.c.l.b16 %v551
    %v620 = vunpack.c.l.b16 %v552
    %v621 = vunpack.c.l.b16 %v553
    %v622 = vunpack.c.l.b16 %v554
    %v623 = vunpack.c.l.b16 %v555
    %v624 = vunpack.c.l.b16 %v556
    %v625 = vunpack.c.l.b16 %v557
    %v626 = vunpack.c.l.b16 %v558
    %v627 = vunpack.c.l.b16 %v559
    %v628 = vunpack.c.l.b16 %v560
    %v629 = vunpack.c.l.b16 %v561
    %v630 = vunpack.c.l.b16 %v562
    %v631 = vunpack.c.l.b16 %v563
    %v632 = vunpack.c.l.b16 %v564
    %v633 = vpack.c.b16 %v602, %v601
    %v634 = vpack.c.b16 %v604, %v603
    %v635 = vpack.c.b16 %v606, %v605
    %v636 = vpack.c.b16 %v608, %v607
    %v637 = vpack.c.b16 %v610, %v609
    %v638 = vpack.c.b16 %v612, %v611
    %v639 = vpack.c.b16 %v614, %v613
    %v640 = vpack.c.b16 %v616, %v615
    %v641 = vpack.c.b16 %v618, %v617
    %v642 = vpack.c.b16 %v620, %v619
    %v643 = vpack.c.b16 %v622, %v621
    %v644 = vpack.c.b16 %v624, %v623
    %v645 = vpack.c.b16 %v626, %v625
    %v646 = vpack.c.b16 %v628, %v627
    %v647 = vpack.c.b16 %v630, %v629
    %v648 = vpack.c.b16 %v632, %v631
    %665 = vmatpush.bf16.msra.mxu0 %v640
    %666 = vmatpush.bf16.msra.mxu0 %v639
    %667 = vmatpush.bf16.msra.mxu0 %v638
    %668 = vmatpush.bf16.msra.mxu0 %v637
    %669 = vmatpush.bf16.msra.mxu0 %v636
    %670 = vmatpush.bf16.msra.mxu0 %v635
    %671 = vmatpush.bf16.msra.mxu0 %v634
    %672 = vmatpush.bf16.msra.mxu0 %v633
    %673 = vmatmul.bf16.gmra.mxu0 %v517
    %v674 = vpop.f32.mrf.mxu0
    %v675 = vadd.f32 %v567, %v674
    %v676 = vpop.f32.mrf.mxu0
    %v677 = vadd.f32 %v567, %v676
    %678 = vmatmul.bf16.gmra.mxu0 %v519
    %v679 = vpop.f32.mrf.mxu0
    %v680 = vadd.f32 %v567, %v679
    %v681 = vpop.f32.mrf.mxu0
    %v682 = vadd.f32 %v567, %v681
    %683 = vmatmul.bf16.gmra.mxu0 %v521
    %v684 = vpop.f32.mrf.mxu0
    %v685 = vadd.f32 %v567, %v684
    %v686 = vpop.f32.mrf.mxu0
    %v687 = vadd.f32 %v567, %v686
    %688 = vmatmul.bf16.gmra.mxu0 %v523
    %v689 = vpop.f32.mrf.mxu0
    %v690 = vadd.f32 %v567, %v689
    %v691 = vpop.f32.mrf.mxu0
    %v692 = vadd.f32 %v567, %v691
    %693 = vmatmul.bf16.gmra.mxu0 %v525
    %v694 = vpop.f32.mrf.mxu0
    %v695 = vadd.f32 %v567, %v694
    %v696 = vpop.f32.mrf.mxu0
    %v697 = vadd.f32 %v567, %v696
    %698 = vmatmul.bf16.gmra.mxu0 %v527
    %v699 = vpop.f32.mrf.mxu0
    %v700 = vadd.f32 %v567, %v699
    %v701 = vpop.f32.mrf.mxu0
    %v702 = vadd.f32 %v567, %v701
    %703 = vmatmul.bf16.gmra.mxu0 %v529
    %v704 = vpop.f32.mrf.mxu0
    %v705 = vadd.f32 %v567, %v704
    %v706 = vpop.f32.mrf.mxu0
    %v707 = vadd.f32 %v567, %v706
    %708 = vmatmul.bf16.gmra.mxu0 %v531
    %v709 = vpop.f32.mrf.mxu0
    %v710 = vadd.f32 %v567, %v709
    %v711 = vpop.f32.mrf.mxu0
    %v712 = vadd.f32 %v567, %v711
    %713 = vdwg.mxu0
    %714 = vmatpush.bf16.msra.mxu0 %v648
    %715 = vmatpush.bf16.msra.mxu0 %v647
    %716 = vmatpush.bf16.msra.mxu0 %v646
    %717 = vmatpush.bf16.msra.mxu0 %v645
    %718 = vmatpush.bf16.msra.mxu0 %v644
    %719 = vmatpush.bf16.msra.mxu0 %v643
    %720 = vmatpush.bf16.msra.mxu0 %v642
    %721 = vmatpush.bf16.msra.mxu0 %v641
    %722 = vmatmul.bf16.gmra.mxu0 %v518
    %v723 = vpop.f32.mrf.mxu0
    %v724 = vadd.f32 %v675, %v723
    %v725 = vpop.f32.mrf.mxu0
    %v726 = vadd.f32 %v677, %v725
    %727 = vmatmul.bf16.gmra.mxu0 %v520
    %v728 = vpop.f32.mrf.mxu0
    %v729 = vadd.f32 %v680, %v728
    %v730 = vpop.f32.mrf.mxu0
    %v731 = vadd.f32 %v682, %v730
    %732 = vmatmul.bf16.gmra.mxu0 %v522
    %v733 = vpop.f32.mrf.mxu0
    %v734 = vadd.f32 %v685, %v733
    %v735 = vpop.f32.mrf.mxu0
    %v736 = vadd.f32 %v687, %v735
    %737 = vmatmul.bf16.gmra.mxu0 %v524
    %v738 = vpop.f32.mrf.mxu0
    %v739 = vadd.f32 %v690, %v738
    %v740 = vpop.f32.mrf.mxu0
    %v741 = vadd.f32 %v692, %v740
    %742 = vmatmul.bf16.gmra.mxu0 %v526
    %v743 = vpop.f32.mrf.mxu0
    %v744 = vadd.f32 %v695, %v743
    %v745 = vpop.f32.mrf.mxu0
    %v746 = vadd.f32 %v697, %v745
    %747 = vmatmul.bf16.gmra.mxu0 %v528
    %v748 = vpop.f32.mrf.mxu0
    %v749 = vadd.f32 %v700, %v748
    %v750 = vpop.f32.mrf.mxu0
    %v751 = vadd.f32 %v702, %v750
    %752 = vmatmul.bf16.gmra.mxu0 %v530
    %v753 = vpop.f32.mrf.mxu0
    %v754 = vadd.f32 %v705, %v753
    %v755 = vpop.f32.mrf.mxu0
    %v756 = vadd.f32 %v707, %v755
    %757 = vmatmul.bf16.gmra.mxu0 %v532
    %v758 = vpop.f32.mrf.mxu0
    %v759 = vadd.f32 %v710, %v758
    %v760 = vpop.f32.mrf.mxu0
    %v761 = vadd.f32 %v712, %v760
    %762 = vdwg.mxu0
    %v763 = vmax.f32 %v724, 0.0
    %v764 = vmax.f32 %v726, 0.0
    %v765 = vmax.f32 %v729, 0.0
    %v766 = vmax.f32 %v731, 0.0
    %v767 = vmax.f32 %v734, 0.0
    %v768 = vmax.f32 %v736, 0.0
    %v769 = vmax.f32 %v739, 0.0
    %v770 = vmax.f32 %v741, 0.0
    %v771 = vmax.f32 %v744, 0.0
    %v772 = vmax.f32 %v746, 0.0
    %v773 = vmax.f32 %v749, 0.0
    %v774 = vmax.f32 %v751, 0.0
    %v775 = vmax.f32 %v754, 0.0
    %v776 = vmax.f32 %v756, 0.0
    %v777 = vmax.f32 %v759, 0.0
    %v778 = vmax.f32 %v761, 0.0
    %v779 = vpack.c.bf16 %v764, %v763
    %v780 = vpack.c.bf16 %v766, %v765
    %v781 = vpack.c.bf16 %v768, %v767
    %v782 = vpack.c.bf16 %v770, %v769
    %v783 = vpack.c.bf16 %v772, %v771
    %v784 = vpack.c.bf16 %v774, %v773
    %v785 = vpack.c.bf16 %v776, %v775
    %v786 = vpack.c.bf16 %v778, %v777
    %v787 = vld [vmem:[%s6] sm:$0xf]
    %v788 = vld [vmem:[%s6 + $0x4] sm:$0xf]
    %v789 = vld [vmem:[%s6 + $0x8] sm:$0xf]
    %v790 = vld [vmem:[%s6 + $0xc] sm:$0xf]
    %v791 = vld [vmem:[%s6 + $0x10] sm:$0xf]
    %v792 = vld [vmem:[%s6 + $0x14] sm:$0xf]
    %v793 = vld [vmem:[%s6 + $0x18] sm:$0xf]
    %v794 = vld [vmem:[%s6 + $0x1c] sm:$0xf]
    %v795 = vld [vmem:[%s6 + $0x20] sm:$0xf]
    %v796 = vld [vmem:[%s6 + $0x24] sm:$0xf]
    %v797 = vld [vmem:[%s6 + $0x28] sm:$0xf]
    %v798 = vld [vmem:[%s6 + $0x2c] sm:$0xf]
    %v799 = vld [vmem:[%s6 + $0x30] sm:$0xf]
    %v800 = vld [vmem:[%s6 + $0x34] sm:$0xf]
    %v801 = vld [vmem:[%s6 + $0x38] sm:$0xf]
    %v802 = vld [vmem:[%s6 + $0x3c] sm:$0xf]
    %v803 = vld [vmem:[%s7] sm:$0x1]
    %v805 = vperm.slane %v803, 0
    %v823 = vunpack.c.l.b16 %v787
    %v824 = vunpack.c.l.b16 %v788
    %v825 = vunpack.c.l.b16 %v789
    %v826 = vunpack.c.l.b16 %v790
    %v827 = vunpack.c.l.b16 %v791
    %v828 = vunpack.c.l.b16 %v792
    %v829 = vunpack.c.l.b16 %v793
    %v830 = vunpack.c.l.b16 %v794
    %v831 = vunpack.c.l.b16 %v795
    %v832 = vunpack.c.l.b16 %v796
    %v833 = vunpack.c.l.b16 %v797
    %v834 = vunpack.c.l.b16 %v798
    %v835 = vunpack.c.l.b16 %v799
    %v836 = vunpack.c.l.b16 %v800
    %v837 = vunpack.c.l.b16 %v801
    %v838 = vunpack.c.l.b16 %v802
    %v839 = vpack.c.b16 %v824, %v823
    %v840 = vpack.c.b16 %v826, %v825
    %v841 = vpack.c.b16 %v828, %v827
    %v842 = vpack.c.b16 %v830, %v829
    %v843 = vpack.c.b16 %v832, %v831
    %v844 = vpack.c.b16 %v834, %v833
    %v845 = vpack.c.b16 %v836, %v835
    %v846 = vpack.c.b16 %v838, %v837
    %855 = vmatpush.bf16.msra.mxu0 %v846
    %856 = vmatpush.bf16.msra.mxu0 %v845
    %857 = vmatpush.bf16.msra.mxu0 %v844
    %858 = vmatpush.bf16.msra.mxu0 %v843
    %859 = vmatpush.bf16.msra.mxu0 %v842
    %860 = vmatpush.bf16.msra.mxu0 %v841
    %861 = vmatpush.bf16.msra.mxu0 %v840
    %862 = vmatpush.bf16.msra.mxu0 %v839
    %863 = vmatmul.bf16.gmra.mxu0 %v779
    %v864 = vpop.f32.mrf.mxu0
    %v865 = vadd.f32 %v805, %v864
    %v866 = vpop.f32.mrf.mxu0
    %v867 = vadd.f32 %v805, %v866
    %868 = vmatmul.bf16.gmra.mxu0 %v780
    %v869 = vpop.f32.mrf.mxu0
    %v870 = vadd.f32 %v805, %v869
    %v871 = vpop.f32.mrf.mxu0
    %v872 = vadd.f32 %v805, %v871
    %873 = vmatmul.bf16.gmra.mxu0 %v781
    %v874 = vpop.f32.mrf.mxu0
    %v875 = vadd.f32 %v805, %v874
    %v876 = vpop.f32.mrf.mxu0
    %v877 = vadd.f32 %v805, %v876
    %878 = vmatmul.bf16.gmra.mxu0 %v782
    %v879 = vpop.f32.mrf.mxu0
    %v880 = vadd.f32 %v805, %v879
    %v881 = vpop.f32.mrf.mxu0
    %v882 = vadd.f32 %v805, %v881
    %883 = vmatmul.bf16.gmra.mxu0 %v783
    %v884 = vpop.f32.mrf.mxu0
    %v885 = vadd.f32 %v805, %v884
    %v886 = vpop.f32.mrf.mxu0
    %v887 = vadd.f32 %v805, %v886
    %888 = vmatmul.bf16.gmra.mxu0 %v784
    %v889 = vpop.f32.mrf.mxu0
    %v890 = vadd.f32 %v805, %v889
    %v891 = vpop.f32.mrf.mxu0
    %v892 = vadd.f32 %v805, %v891
    %893 = vmatmul.bf16.gmra.mxu0 %v785
    %v894 = vpop.f32.mrf.mxu0
    %v895 = vadd.f32 %v805, %v894
    %v896 = vpop.f32.mrf.mxu0
    %v897 = vadd.f32 %v805, %v896
    %898 = vmatmul.bf16.gmra.mxu0 %v786
    %v899 = vpop.f32.mrf.mxu0
    %v900 = vadd.f32 %v805, %v899
    %v901 = vpop.f32.mrf.mxu0
    %v902 = vadd.f32 %v805, %v901
    %903 = vdwg.mxu0
    %904 = vst [vmem:[%s8] sm:$0xff] %v865
    %905 = vst [vmem:[%s8 + $0x8] sm:$0xff] %v867
    %906 = vst [vmem:[%s8 + $0x10] sm:$0xff] %v870
    %907 = vst [vmem:[%s8 + $0x18] sm:$0xff] %v872
    %908 = vst [vmem:[%s8 + $0x20] sm:$0xff] %v875
    %909 = vst [vmem:[%s8 + $0x28] sm:$0xff] %v877
    %910 = vst [vmem:[%s8 + $0x30] sm:$0xff] %v880
    %911 = vst [vmem:[%s8 + $0x38] sm:$0xff] %v882
    %912 = vst [vmem:[%s8 + $0x40] sm:$0xff] %v885
    %913 = vst [vmem:[%s8 + $0x48] sm:$0xff] %v887
    %914 = vst [vmem:[%s8 + $0x50] sm:$0xff] %v890
    %915 = vst [vmem:[%s8 + $0x58] sm:$0xff] %v892
    %916 = vst [vmem:[%s8 + $0x60] sm:$0xff] %v895
    %917 = vst [vmem:[%s8 + $0x68] sm:$0xff] %v897
    %918 = vst [vmem:[%s8 + $0x70] sm:$0xff] %v900
    %919 = vst [vmem:[%s8 + $0x78] sm:$0xff] %v902
  $region41: #{gnn_forward.3} parent=0 // pred_fallthru
    _
  // Predicated region
  $region42: #{gnn_forward.3} parent=0 // pred_check
    _
  $region43: #{gnn_forward.3} parent=0 // pred_check_branch
    %921 = sbr.rel (0) target = $region45
  $region44: #{gnn_forward.3} parent=0 // pred_region
    _
  $region45: #{gnn_forward.3} parent=0 // pred_fallthru
    _
  // Predicated region
  $region46: #{gnn_forward.3} parent=0 // pred_check
    _
  $region47: #{gnn_forward.3} parent=0 // pred_check_branch
    %923 = sbr.rel (0) target = $region49
  $region48: #{gnn_forward.3} parent=0 // pred_region
    _
  $region49: #{gnn_forward.3} parent=0 // pred_fallthru
    _

</llo_original>
